<compile_context>
chip_gen: v7x
topology: tpu7x:2x2x1
jax: 0.10.0
libtpu: 0.0.40
codegen_flags: <defaults>
</compile_context>

<pallas_src>
import jax
import jax.numpy as jnp
from jax.experimental import pallas as pl
from jax.experimental.pallas import tpu as pltpu


FP = 128     # lane width of each packed weight/bias block (MXU/vreg lane dim)
KF = 16      # live feature width (= input_feat after the module's padding)
GPT = 8      # graphs per grid tile -> M = GPT*KF = 128 rows per step

# Column-block indices into the packed slabs (each block is FP lanes wide).
# Weight slab (KF, 9*FP) bf16: [w_gcn1 | w_gcn2 | w1_i w1_c w1_o | w2_i w2_c w2_o | w_lin]
# Bias   slab (1, 11*FP) f32:  [b_gcn1 | b_gcn2 | b1_i b1_c b1_o | b2_i b2_c b2_o | b_lin
#                               | w_c_o(lstm1) | w_c_o(lstm2)]
_W_GCN1, _W_GCN2 = 0, 1
_GATES1, _GATES2 = 2, 5          # 3 blocks each, gate order [i | c | o]
_W_LIN = 8
_PEEP1, _PEEP2 = 9, 10           # output-gate peepholes (bias slab only)


# ----------------------------- Pallas kernel --------------------------------

def stgcn_kernel(x_ref, a_ref, w_ref, b_ref, out_ref):
    f32 = jnp.float32
    bf16 = jnp.bfloat16

    def wblk(i, n=1):            # static, 128-aligned lane slice of weight slab
        return w_ref[:, i * FP:(i + n) * FP]          # (KF, n*FP) bf16

    def bblk(i, n=1):            # static, 128-aligned lane slice of bias slab
        return b_ref[:, i * FP:(i + n) * FP]          # (1, n*FP) f32

    a = a_ref[...]               # (M, M) bf16 block-diag normalized adjacency
    x = x_ref[...]               # (M, KF) bf16 stacked node features

    # ---- GCNConv #1 (improved=True): A_norm @ (X @ W) + b, then ReLU ----
    xw = jnp.dot(x, wblk(_W_GCN1), preferred_element_type=f32)
    x = jnp.dot(a, xw.astype(bf16), preferred_element_type=f32) + bblk(_W_GCN1)
    x = jnp.maximum(x, 0.0)

    # ---- GCNConv #2 ----
    xw = jnp.dot(x[:, :KF].astype(bf16), wblk(_W_GCN2), preferred_element_type=f32)
    x = jnp.dot(a, xw.astype(bf16), preferred_element_type=f32) + bblk(_W_GCN2)
    x = jnp.maximum(x, 0.0)

    # ---- GCLSTM #1 (H=C=None -> zeros):
    #   z = X @ W_{i,c,o} + (b + b_cheb)_{i,c,o}   (ChebConv(K=1) on H=0 == its bias)
    #   C = i * tanh(z_c);  O = sigmoid(z_o + w_c_o * C);  H = O * tanh(C)
    z = (jnp.dot(x[:, :KF].astype(bf16), wblk(_GATES1, 3), preferred_element_type=f32)
         + bblk(_GATES1, 3))
    i1 = jax.nn.sigmoid(z[:, 0:FP])
    t1 = jnp.tanh(z[:, FP:2 * FP])
    c1 = i1 * t1
    o1 = jax.nn.sigmoid(z[:, 2 * FP:3 * FP] + bblk(_PEEP1) * c1)
    h1 = o1 * jnp.tanh(c1)

    # ---- GCLSTM #2: input is h1, hidden/cell again start as zeros ----
    z = (jnp.dot(h1[:, :KF].astype(bf16), wblk(_GATES2, 3), preferred_element_type=f32)
         + bblk(_GATES2, 3))
    i2 = jax.nn.sigmoid(z[:, 0:FP])
    t2 = jnp.tanh(z[:, FP:2 * FP])
    c2 = i2 * t2
    o2 = jax.nn.sigmoid(z[:, 2 * FP:3 * FP] + bblk(_PEEP2) * c2)
    h2 = o2 * jnp.tanh(c2)

    # ---- ReLU + Linear (output lane-padded to FP; valid cols sliced in JAX) ----
    x = jnp.maximum(h2, 0.0)
    out_ref[...] = (jnp.dot(x[:, :KF].astype(bf16), wblk(_W_LIN), preferred_element_type=f32)
                    + bblk(_W_LIN)).astype(out_ref.dtype)


def social_stgcn_forward(x_rows, a_tiles, w_slab, b_slab, out_dim):
    """x_rows: (B*KF, KF) bf16, a_tiles: (T*M, M) bf16 block-diag adjacency tiles,
    w_slab: (KF, 9*FP) bf16, b_slab: (1, 11*FP) f32.  Returns (B*KF, out_dim) f32."""
    M = GPT * KF
    rows = x_rows.shape[0]
    assert rows % M == 0, "batch must be a multiple of GPT graphs"
    T = rows // M

    out_padded = pl.pallas_call(
        stgcn_kernel,
        out_shape=jax.ShapeDtypeStruct((rows, FP), jnp.float32),
        grid_spec=pltpu.PrefetchScalarGridSpec(
            num_scalar_prefetch=0,
            grid=(T,),
            in_specs=[
                pl.BlockSpec((M, KF), lambda t: (t, 0)),          # per-step node rows
                pl.BlockSpec((M, M), lambda t: (t, 0)),           # per-step block-diag A
                pl.BlockSpec(w_slab.shape, lambda t: (0, 0)),     # VMEM-resident weights
                pl.BlockSpec(b_slab.shape, lambda t: (0, 0)),     # VMEM-resident biases
            ],
            out_specs=pl.BlockSpec((M, FP), lambda t: (t, 0)),
        ),
        compiler_params=pltpu.CompilerParams(
            dimension_semantics=("parallel",)),
    )(x_rows, a_tiles, w_slab, b_slab)
    return out_padded[:, :out_dim]


# ------------------------------- JAX glue ------------------------------------

def build_batch(key, n_graphs, input_feat, n_nodes, n_feat, n_edges):
    """Build a batch of graphs: data.x / edge_index per graph, apply the
    module's zero-padding, and precompute the dense improved-GCN normalized
    adjacency.  Edges are sampled with src != dst so A_hat = A + 2*I matches
    PyG gcn_norm(improved=True, add_remaining_self_loops) exactly."""
    kx, ks, ko = jax.random.split(key, 3)
    x = jax.random.normal(kx, (n_graphs, n_nodes, n_feat), jnp.float32)
    src = jax.random.randint(ks, (n_graphs, n_edges), 0, n_nodes)
    off = jax.random.randint(ko, (n_graphs, n_edges), 1, n_nodes)
    dst = (src + off) % n_nodes                      # never a self-loop

    # torch.cat padding: rows -> input_feat, then cols -> input_feat
    x_pad = jnp.zeros((n_graphs, input_feat, input_feat), jnp.float32)
    x_pad = x_pad.at[:, :n_nodes, :n_feat].set(x)

    # Dense A_hat[target, source]; improved=True => self-loop weight 2.0
    g = jnp.arange(n_graphs)[:, None]
    A = jnp.zeros((n_graphs, input_feat, input_feat), jnp.float32)
    A = A.at[g, dst, src].add(1.0)
    A_hat = A + 2.0 * jnp.eye(input_feat, dtype=jnp.float32)[None]
    deg = A_hat.sum(axis=-1)
    dinv = jnp.where(deg > 0, 1.0 / jnp.sqrt(deg), 0.0)
    a_norm = dinv[:, :, None] * A_hat * dinv[:, None, :]
    return x_pad, a_norm


def pack_batch(x_pad, a_norm):
    """Stack GPT graphs per grid tile along the row axis (M = GPT*KF = 128) and
    build the matching (M, M) block-diagonal adjacency tile per step."""
    B, n, _ = x_pad.shape
    assert B % GPT == 0
    T = B // GPT
    x_rows = x_pad.reshape(B * n, n).astype(jnp.bfloat16)            # (B*16, 16)
    a = a_norm.reshape(T, GPT, n, n)
    eye = jnp.eye(GPT, dtype=a_norm.dtype)
    bd = jnp.einsum('tgij,gh->tgihj', a, eye)                        # (T,G,n,G,n)
    a_tiles = bd.reshape(T * GPT * n, GPT * n).astype(jnp.bfloat16)  # (T*128, 128)
    return x_rows, a_tiles


def init_params(key, F, linear_output):
    ks = jax.random.split(key, 14)
    scale = 0.3

    def rn(k, shape):
        return scale * jax.random.normal(k, shape, jnp.float32)

    return dict(
        # GCNConv weights stored as [in, out] (PyG applies x @ W^T; we fold it)
        w_gcn1=rn(ks[0], (F, F)), b_gcn1=rn(ks[1], (1, F)),
        w_gcn2=rn(ks[2], (F, F)), b_gcn2=rn(ks[3], (1, F)),
        # GCLSTM: only the live gates [i | c | o] (forget gate is dead at C=0),
        # plus ChebConv(K=1) biases and the output-gate peephole weight.
        w_lstm1=rn(ks[4], (F, 3 * F)), b_lstm1=rn(ks[5], (1, 3 * F)),
        bc_lstm1=rn(ks[6], (1, 3 * F)), wco_lstm1=rn(ks[7], (1, F)),
        w_lstm2=rn(ks[8], (F, 3 * F)), b_lstm2=rn(ks[9], (1, 3 * F)),
        bc_lstm2=rn(ks[10], (1, 3 * F)), wco_lstm2=rn(ks[11], (1, F)),
        # Final nn.Linear stored as [in, out]
        w_lin=rn(ks[12], (F, linear_output)), b_lin=rn(ks[13], (1, linear_output)),
    )


def pack_params(p):
    """Zero-pad every weight/bias to FP lanes (K dim stays at its true width
    KF=16) and pack into two slabs: one bf16 weight slab, one f32 bias slab."""
    def pad_lanes(w):                 # (KF, c) -> (KF, FP)
        return jnp.zeros((KF, FP), jnp.float32).at[:, :w.shape[1]].set(w)

    def pad_b(b):                     # (1, c) -> (1, FP)
        return jnp.zeros((1, FP), jnp.float32).at[:, :b.shape[1]].set(b)

    def split3(a):
        return jnp.split(a, 3, axis=1)

    w_blocks = [pad_lanes(p["w_gcn1"]), pad_lanes(p["w_gcn2"])]
    w_blocks += [pad_lanes(w) for w in split3(p["w_lstm1"])]
    w_blocks += [pad_lanes(w) for w in split3(p["w_lstm2"])]
    w_blocks += [pad_lanes(p["w_lin"])]
    w_slab = jnp.concatenate(w_blocks, axis=1).astype(jnp.bfloat16)   # (KF, 9*FP)

    # Fold gate bias + ChebConv(K=1, H=0) bias into one bias per gate.
    b1 = p["b_lstm1"] + p["bc_lstm1"]
    b2 = p["b_lstm2"] + p["bc_lstm2"]
    b_blocks = [pad_b(p["b_gcn1"]), pad_b(p["b_gcn2"])]
    b_blocks += [pad_b(b) for b in split3(b1)]
    b_blocks += [pad_b(b) for b in split3(b2)]
    b_blocks += [pad_b(p["b_lin"]),
                 pad_b(p["wco_lstm1"]), pad_b(p["wco_lstm2"])]
    b_slab = jnp.concatenate(b_blocks, axis=1)                        # (1, 11*FP) f32
    return w_slab, b_slab


if __name__ == "__main__":
    INPUT_FEAT = 16      # after the module's padding: 16 nodes x 16 features
    LINEAR_OUT = 3       # module default linear_output=3
    N_NODES, N_FEAT, N_EDGES = 12, 2, 24
    N_GRAPHS = 32        # 32 graphs -> 4 grid steps of 8 graphs (M=128 rows each)

    key = jax.random.PRNGKey(0)
    kg, kp = jax.random.split(key)
    x_pad, a_norm = build_batch(kg, N_GRAPHS, INPUT_FEAT, N_NODES, N_FEAT, N_EDGES)
    params = init_params(kp, INPUT_FEAT, LINEAR_OUT)
    w_slab, b_slab = pack_params(params)
    x_rows, a_tiles = pack_batch(x_pad, a_norm)

    out = social_stgcn_forward(x_rows, a_tiles, w_slab, b_slab, LINEAR_OUT)
    jax.block_until_ready(out)
    out = out.reshape(N_GRAPHS, INPUT_FEAT, LINEAR_OUT)   # per-graph (16, 3) results
    assert out.shape == (N_GRAPHS, INPUT_FEAT, LINEAR_OUT)
    print("KERNEL_OK")
</pallas_src>

<mosaic_0001>
module attributes {stable_mosaic.version = 11 : i64} {
  func.func @stgcn_kernel(%arg0: i32, %arg1: memref<128x16xbf16, #tpu.memory_space<vmem>>, %arg2: memref<128x128xbf16, #tpu.memory_space<vmem>>, %arg3: memref<16x1152xbf16, #tpu.memory_space<vmem>>, %arg4: memref<1x1408xf32, #tpu.memory_space<vmem>>, %arg5: memref<128x128xf32, #tpu.memory_space<vmem>>) attributes {dimension_semantics = [#tpu.dimension_semantics<parallel>], iteration_bounds = array<i64: 4>, scalar_prefetch = 0 : i64, scratch_operands = 0 : i64, tpu.core_type = #tpu.core_type<tc>, window_params = [{transform_indices = @transform_0, window_bounds = array<i64: 128, 16>}, {transform_indices = @transform_1, window_bounds = array<i64: 128, 128>}, {pipeline_mode = #tpu.pipeline_mode<synchronous>, transform_indices = @transform_2, window_bounds = array<i64: 16, 1152>}, {pipeline_mode = #tpu.pipeline_mode<synchronous>, transform_indices = @transform_3, window_bounds = array<i64: 1, 1408>}, {transform_indices = @transform_4, window_bounds = array<i64: 128, 128>}]} {
    %c0 = arith.constant 0 : index
    %c0_0 = arith.constant 0 : index
    %0 = vector.load %arg2[%c0, %c0_0] : memref<128x128xbf16, #tpu.memory_space<vmem>>, vector<128x128xbf16>
    %c0_1 = arith.constant 0 : index
    %c0_2 = arith.constant 0 : index
    %1 = vector.load %arg1[%c0_1, %c0_2] : memref<128x16xbf16, #tpu.memory_space<vmem>>, vector<128x16xbf16>
    %c0_3 = arith.constant 0 : index
    %c0_4 = arith.constant 0 : index
    %2 = vector.load %arg3[%c0_3, %c0_4] : memref<16x1152xbf16, #tpu.memory_space<vmem>>, vector<16x128xbf16>
    %cst = arith.constant dense<0.000000e+00> : vector<128x128xf32>
    %3 = tpu.matmul %1, %2, %cst {dimension_numbers = #tpu.dot_dimension_numbers<[1], [0], [0], [1], [0, 0, 1, 1], [], []>} : vector<128x16xbf16>, vector<16x128xbf16>, vector<128x128xf32> -> vector<128x128xf32>
    %4 = arith.truncf %3 : vector<128x128xf32> to vector<128x128xbf16>
    %cst_5 = arith.constant dense<0.000000e+00> : vector<128x128xf32>
    %5 = tpu.matmul %0, %4, %cst_5 {dimension_numbers = #tpu.dot_dimension_numbers<[1], [0], [0], [1], [0, 0, 1, 1], [], []>} : vector<128x128xbf16>, vector<128x128xbf16>, vector<128x128xf32> -> vector<128x128xf32>
    %c0_6 = arith.constant 0 : index
    %c0_7 = arith.constant 0 : index
    %6 = vector.load %arg4[%c0_6, %c0_7] : memref<1x1408xf32, #tpu.memory_space<vmem>>, vector<1x128xf32>
    %7 = vector.broadcast %6 : vector<1x128xf32> to vector<128x128xf32>
    %8 = arith.addf %5, %7 : vector<128x128xf32>
    %cst_8 = arith.constant 0.000000e+00 : f32
    %9 = vector.broadcast %cst_8 : f32 to vector<128x128xf32>
    %10 = arith.maximumf %8, %9 : vector<128x128xf32>
    %11 = vector.extract_strided_slice %10 {offsets = [0, 0], sizes = [128, 16], strides = [1, 1]} : vector<128x128xf32> to vector<128x16xf32>
    %12 = arith.truncf %11 : vector<128x16xf32> to vector<128x16xbf16>
    %c0_9 = arith.constant 0 : index
    %c128 = arith.constant 128 : index
    %13 = vector.load %arg3[%c0_9, %c128] : memref<16x1152xbf16, #tpu.memory_space<vmem>>, vector<16x128xbf16>
    %cst_10 = arith.constant dense<0.000000e+00> : vector<128x128xf32>
    %14 = tpu.matmul %12, %13, %cst_10 {dimension_numbers = #tpu.dot_dimension_numbers<[1], [0], [0], [1], [0, 0, 1, 1], [], []>} : vector<128x16xbf16>, vector<16x128xbf16>, vector<128x128xf32> -> vector<128x128xf32>
    %15 = arith.truncf %14 : vector<128x128xf32> to vector<128x128xbf16>
    %cst_11 = arith.constant dense<0.000000e+00> : vector<128x128xf32>
    %16 = tpu.matmul %0, %15, %cst_11 {dimension_numbers = #tpu.dot_dimension_numbers<[1], [0], [0], [1], [0, 0, 1, 1], [], []>} : vector<128x128xbf16>, vector<128x128xbf16>, vector<128x128xf32> -> vector<128x128xf32>
    %c0_12 = arith.constant 0 : index
    %c128_13 = arith.constant 128 : index
    %17 = vector.load %arg4[%c0_12, %c128_13] : memref<1x1408xf32, #tpu.memory_space<vmem>>, vector<1x128xf32>
    %18 = vector.broadcast %17 : vector<1x128xf32> to vector<128x128xf32>
    %19 = arith.addf %16, %18 : vector<128x128xf32>
    %cst_14 = arith.constant 0.000000e+00 : f32
    %20 = vector.broadcast %cst_14 : f32 to vector<128x128xf32>
    %21 = arith.maximumf %19, %20 : vector<128x128xf32>
    %22 = vector.extract_strided_slice %21 {offsets = [0, 0], sizes = [128, 16], strides = [1, 1]} : vector<128x128xf32> to vector<128x16xf32>
    %23 = arith.truncf %22 : vector<128x16xf32> to vector<128x16xbf16>
    %c0_15 = arith.constant 0 : index
    %c256 = arith.constant 256 : index
    %24 = vector.load %arg3[%c0_15, %c256] : memref<16x1152xbf16, #tpu.memory_space<vmem>>, vector<16x384xbf16>
    %cst_16 = arith.constant dense<0.000000e+00> : vector<128x384xf32>
    %25 = tpu.matmul %23, %24, %cst_16 {dimension_numbers = #tpu.dot_dimension_numbers<[1], [0], [0], [1], [0, 0, 1, 1], [], []>} : vector<128x16xbf16>, vector<16x384xbf16>, vector<128x384xf32> -> vector<128x384xf32>
    %c0_17 = arith.constant 0 : index
    %c256_18 = arith.constant 256 : index
    %26 = vector.load %arg4[%c0_17, %c256_18] : memref<1x1408xf32, #tpu.memory_space<vmem>>, vector<1x384xf32>
    %27 = vector.broadcast %26 : vector<1x384xf32> to vector<128x384xf32>
    %28 = arith.addf %25, %27 : vector<128x384xf32>
    %29 = vector.extract_strided_slice %28 {offsets = [0, 0], sizes = [128, 128], strides = [1, 1]} : vector<128x384xf32> to vector<128x128xf32>
    %30 = arith.negf %29 : vector<128x128xf32>
    %31 = math.exp %30 : vector<128x128xf32>
    %cst_19 = arith.constant 1.000000e+00 : f32
    %32 = vector.broadcast %cst_19 : f32 to vector<128x128xf32>
    %33 = arith.addf %32, %31 : vector<128x128xf32>
    %34 = arith.divf %32, %33 : vector<128x128xf32>
    %35 = vector.extract_strided_slice %28 {offsets = [0, 128], sizes = [128, 128], strides = [1, 1]} : vector<128x384xf32> to vector<128x128xf32>
    %36 = math.tanh %35 : vector<128x128xf32>
    %37 = arith.mulf %34, %36 : vector<128x128xf32>
    %38 = vector.extract_strided_slice %28 {offsets = [0, 256], sizes = [128, 128], strides = [1, 1]} : vector<128x384xf32> to vector<128x128xf32>
    %c0_20 = arith.constant 0 : index
    %c1152 = arith.constant 1152 : index
    %39 = vector.load %arg4[%c0_20, %c1152] : memref<1x1408xf32, #tpu.memory_space<vmem>>, vector<1x128xf32>
    %40 = vector.broadcast %39 : vector<1x128xf32> to vector<128x128xf32>
    %41 = arith.mulf %40, %37 : vector<128x128xf32>
    %42 = arith.addf %38, %41 : vector<128x128xf32>
    %43 = arith.negf %42 : vector<128x128xf32>
    %44 = math.exp %43 : vector<128x128xf32>
    %cst_21 = arith.constant 1.000000e+00 : f32
    %45 = vector.broadcast %cst_21 : f32 to vector<128x128xf32>
    %46 = arith.addf %45, %44 : vector<128x128xf32>
    %47 = arith.divf %45, %46 : vector<128x128xf32>
    %48 = math.tanh %37 : vector<128x128xf32>
    %49 = arith.mulf %47, %48 : vector<128x128xf32>
    %50 = vector.extract_strided_slice %49 {offsets = [0, 0], sizes = [128, 16], strides = [1, 1]} : vector<128x128xf32> to vector<128x16xf32>
    %51 = arith.truncf %50 : vector<128x16xf32> to vector<128x16xbf16>
    %c0_22 = arith.constant 0 : index
    %c640 = arith.constant 640 : index
    %52 = vector.load %arg3[%c0_22, %c640] : memref<16x1152xbf16, #tpu.memory_space<vmem>>, vector<16x384xbf16>
    %cst_23 = arith.constant dense<0.000000e+00> : vector<128x384xf32>
    %53 = tpu.matmul %51, %52, %cst_23 {dimension_numbers = #tpu.dot_dimension_numbers<[1], [0], [0], [1], [0, 0, 1, 1], [], []>} : vector<128x16xbf16>, vector<16x384xbf16>, vector<128x384xf32> -> vector<128x384xf32>
    %c0_24 = arith.constant 0 : index
    %c640_25 = arith.constant 640 : index
    %54 = vector.load %arg4[%c0_24, %c640_25] : memref<1x1408xf32, #tpu.memory_space<vmem>>, vector<1x384xf32>
    %55 = vector.broadcast %54 : vector<1x384xf32> to vector<128x384xf32>
    %56 = arith.addf %53, %55 : vector<128x384xf32>
    %57 = vector.extract_strided_slice %56 {offsets = [0, 0], sizes = [128, 128], strides = [1, 1]} : vector<128x384xf32> to vector<128x128xf32>
    %58 = arith.negf %57 : vector<128x128xf32>
    %59 = math.exp %58 : vector<128x128xf32>
    %cst_26 = arith.constant 1.000000e+00 : f32
    %60 = vector.broadcast %cst_26 : f32 to vector<128x128xf32>
    %61 = arith.addf %60, %59 : vector<128x128xf32>
    %62 = arith.divf %60, %61 : vector<128x128xf32>
    %63 = vector.extract_strided_slice %56 {offsets = [0, 128], sizes = [128, 128], strides = [1, 1]} : vector<128x384xf32> to vector<128x128xf32>
    %64 = math.tanh %63 : vector<128x128xf32>
    %65 = arith.mulf %62, %64 : vector<128x128xf32>
    %66 = vector.extract_strided_slice %56 {offsets = [0, 256], sizes = [128, 128], strides = [1, 1]} : vector<128x384xf32> to vector<128x128xf32>
    %c0_27 = arith.constant 0 : index
    %c1280 = arith.constant 1280 : index
    %67 = vector.load %arg4[%c0_27, %c1280] : memref<1x1408xf32, #tpu.memory_space<vmem>>, vector<1x128xf32>
    %68 = vector.broadcast %67 : vector<1x128xf32> to vector<128x128xf32>
    %69 = arith.mulf %68, %65 : vector<128x128xf32>
    %70 = arith.addf %66, %69 : vector<128x128xf32>
    %71 = arith.negf %70 : vector<128x128xf32>
    %72 = math.exp %71 : vector<128x128xf32>
    %cst_28 = arith.constant 1.000000e+00 : f32
    %73 = vector.broadcast %cst_28 : f32 to vector<128x128xf32>
    %74 = arith.addf %73, %72 : vector<128x128xf32>
    %75 = arith.divf %73, %74 : vector<128x128xf32>
    %76 = math.tanh %65 : vector<128x128xf32>
    %77 = arith.mulf %75, %76 : vector<128x128xf32>
    %cst_29 = arith.constant 0.000000e+00 : f32
    %78 = vector.broadcast %cst_29 : f32 to vector<128x128xf32>
    %79 = arith.maximumf %77, %78 : vector<128x128xf32>
    %80 = vector.extract_strided_slice %79 {offsets = [0, 0], sizes = [128, 16], strides = [1, 1]} : vector<128x128xf32> to vector<128x16xf32>
    %81 = arith.truncf %80 : vector<128x16xf32> to vector<128x16xbf16>
    %c0_30 = arith.constant 0 : index
    %c1024 = arith.constant 1024 : index
    %82 = vector.load %arg3[%c0_30, %c1024] : memref<16x1152xbf16, #tpu.memory_space<vmem>>, vector<16x128xbf16>
    %cst_31 = arith.constant dense<0.000000e+00> : vector<128x128xf32>
    %83 = tpu.matmul %81, %82, %cst_31 {dimension_numbers = #tpu.dot_dimension_numbers<[1], [0], [0], [1], [0, 0, 1, 1], [], []>} : vector<128x16xbf16>, vector<16x128xbf16>, vector<128x128xf32> -> vector<128x128xf32>
    %c0_32 = arith.constant 0 : index
    %c1024_33 = arith.constant 1024 : index
    %84 = vector.load %arg4[%c0_32, %c1024_33] : memref<1x1408xf32, #tpu.memory_space<vmem>>, vector<1x128xf32>
    %85 = vector.broadcast %84 : vector<1x128xf32> to vector<128x128xf32>
    %86 = arith.addf %83, %85 : vector<128x128xf32>
    %c0_34 = arith.constant 0 : index
    %c0_35 = arith.constant 0 : index
    %87 = vector.load %arg5[%c0_34, %c0_35] : memref<128x128xf32, #tpu.memory_space<vmem>>, vector<128x128xf32>
    tpu.vector_store %arg5[%c0_34, %c0_35], %86 {strides = array<i32>} : memref<128x128xf32, #tpu.memory_space<vmem>>, vector<128x128xf32>,
    return
  }
  func.func @transform_0(%arg0: i32) -> (i32, i32) {
    %c0_i32 = arith.constant 0 : i32
    %c0_i32_0 = arith.constant 0 : i32
    return %arg0, %c0_i32 : i32, i32
  }
  func.func @transform_1(%arg0: i32) -> (i32, i32) {
    %c0_i32 = arith.constant 0 : i32
    %c0_i32_0 = arith.constant 0 : i32
    return %arg0, %c0_i32 : i32, i32
  }
  func.func @transform_2(%arg0: i32) -> (i32, i32) {
    %c0_i32 = arith.constant 0 : i32
    %c0_i32_0 = arith.constant 0 : i32
    %c0_i32_1 = arith.constant 0 : i32
    return %c0_i32, %c0_i32_0 : i32, i32
  }
  func.func @transform_3(%arg0: i32) -> (i32, i32) {
    %c0_i32 = arith.constant 0 : i32
    %c0_i32_0 = arith.constant 0 : i32
    %c0_i32_1 = arith.constant 0 : i32
    return %c0_i32, %c0_i32_0 : i32, i32
  }
  func.func @transform_4(%arg0: i32) -> (i32, i32) {
    %c0_i32 = arith.constant 0 : i32
    %c0_i32_0 = arith.constant 0 : i32
    return %arg0, %c0_i32 : i32, i32
  }
}

</mosaic_0001>

<llo_original>
// kernel: tpu_custom_call.1
$region0: #{tpu_custom_call.1}
  #allocation0 [shape = 'u32[]', space=smem, size = 0x4, offset = 0x4, fixed_abs, tag = 'smem constant byte address 0x4 - core index']
  #allocation1 [shape = 'u32[144,128]{1,0:T(1,128)}', space=vmem, size = 0x12000, scoped, tag = 'internal scratch']
  %s0 = inlined_call_operand.vmem [shape: bf16[512,16], index: 0, kind: input, shape index: {}]
  %s1 = inlined_call_operand.vmem [shape: bf16[512,128], index: 1, kind: input, shape index: {}]
  %s2 = inlined_call_operand.hbm [shape: bf16[16,1152], index: 2, kind: input, shape index: {}]
  %s3 = inlined_call_operand.vmem [shape: f32[1,1408], index: 3, kind: input, shape index: {}]
  %s4 = inlined_call_operand.hbm [shape: f32[512,128], index: 4, kind: output, shape index: {}]
  %s5 = sld [smem:[#allocation0]]
  $region53: #{tpu_custom_call.1} parent=0
    _
  %s7 = ssub.s32 1, %s5
  %s8 = scalar_select 0, %s7, %s5
  $region1: #{tpu_custom_call.1} parent=0
    #allocation2 [shape = 'u8[36864]{0}', space=vmem, size = 0x9000, scoped, tag = 'input window, operand 2, single buffered']
    #allocation3 [shape = 's32[2]{0}', space=sflag, size = 0x8, scoped, tag = 'scoped memory for tpu_custom_call.1']
    #allocation4 [shape = 's32[2]{0}', space=sflag, size = 0x8, scoped, tag = 'scoped memory for tpu_custom_call.1']
    #allocation5 [shape = 'u8[131072]{0}', space=vmem, size = 0x20000, scoped, tag = 'output window, operand 0']
    %9 = vsyncpa [#allocation3], 0
    %10 = vsyncpa [#allocation4], 0
    %s11 = scalar_lea.sflag [#allocation4], 1
    %12 = vsyncpa %s11, 0
    loop: start=0, step=1, limit=6
    $region2: #{tpu_custom_call.1} parent=1 // loop_pre_header
      _
    $region3: #{tpu_custom_call.1} parent=1 // loop_header
      %s14 = sphi 0, %s18
      %p15 = scmp.ge.s32.totalorder %s14, 6
      %s24 = sphi 0, %s26
      %s27 = sphi 0, %s24
      %s28 = sphi 0, %s27
      %s44 = sphi 0, %s28
      %s50 = sphi 0, %s52
      %s53 = sphi 0, %s50
      %s54 = sphi 0, %s53
      %s70 = sphi 0, %s54
      %s74 = sphi 0, %s74
      %s76 = sphi 0, %s74
      %s77 = sphi 0, %s76
      %s91 = sphi 0, %s77
      %s95 = sphi 0, %s95
      %s97 = sphi 0, %s95
      %s98 = sphi 0, %s97
      %s112 = sphi 0, %s98
      %s118 = sphi 0, %s120
      %s121 = sphi 0, %s118
      %s122 = sphi 0, %s121
      %s138 = sphi 0, %s122
    $region4: #{tpu_custom_call.1} parent=1 // loop_header_branch
      %17 = sbr.rel (%p15) target = $region8
    $region5: #{tpu_custom_call.1} parent=1 // loop_body
      %s19 = ssub.s32 %s14, 1
      %s20 = ssub.s32 %s14, 2
      %s21 = sadd.s32 %s14, 1
      %s22 = ssub.s32 %s14, %s21
      %p23 = scmp.eq.s32.totalorder %s22, 0
      %s25 = sadd.s32 %s24, 1
      %s26 = scalar_select %p23, %s24, %s25
      %p29 = pneg %p23
      %p30 = scmp.eq.s32.totalorder %s14, 3
      %p31 = por %p29, %p30
      %p32 = scmp.ne.s32.totalorder %s24, %s27
      %p33 = scmp.eq.s32.totalorder %s14, 0
      %p34 = por %p32, %p33
      %p35 = scmp.ne.s32.totalorder %s24, %s27
      %p36 = scmp.eq.s32.totalorder %s19, 3
      %p37 = por %p35, %p36
      %p38 = scmp.ne.s32.totalorder %s27, %s28
      %p39 = scmp.eq.s32.totalorder %s19, 0
      %p40 = por %p38, %p39
      %p41 = scmp.ne.s32.totalorder %s27, %s28
      %p42 = scmp.eq.s32.totalorder %s20, 3
      %p43 = por %p41, %p42
      %p45 = scmp.ne.s32.totalorder %s28, %s44
      %p46 = scmp.eq.s32.totalorder %s20, 0
      %p47 = por %p45, %p46
      %s48 = ssub.s32 %s14, %s21
      %p49 = scmp.eq.s32.totalorder %s48, 0
      %s51 = sadd.s32 %s50, 1
      %s52 = scalar_select %p49, %s50, %s51
      %p55 = pneg %p49
      %p56 = scmp.eq.s32.totalorder %s14, 3
      %p57 = por %p55, %p56
      %p58 = scmp.ne.s32.totalorder %s50, %s53
      %p59 = scmp.eq.s32.totalorder %s14, 0
      %p60 = por %p58, %p59
      %p61 = scmp.ne.s32.totalorder %s50, %s53
      %p62 = scmp.eq.s32.totalorder %s19, 3
      %p63 = por %p61, %p62
      %p64 = scmp.ne.s32.totalorder %s53, %s54
      %p65 = scmp.eq.s32.totalorder %s19, 0
      %p66 = por %p64, %p65
      %p67 = scmp.ne.s32.totalorder %s53, %s54
      %p68 = scmp.eq.s32.totalorder %s20, 3
      %p69 = por %p67, %p68
      %p71 = scmp.ne.s32.totalorder %s54, %s70
      %p72 = scmp.eq.s32.totalorder %s20, 0
      %p73 = por %p71, %p72
      %s75 = sadd.s32 %s74, 1
      %p78 = scmp.eq.s32.totalorder %s14, 3
      %p79 = scmp.ne.s32.totalorder %s74, %s76
      %p80 = scmp.eq.s32.totalorder %s14, 0
      %p81 = por %p79, %p80
      %p82 = scmp.ne.s32.totalorder %s74, %s76
      %p83 = scmp.eq.s32.totalorder %s19, 3
      %p84 = por %p82, %p83
      %p85 = scmp.ne.s32.totalorder %s76, %s77
      %p86 = scmp.eq.s32.totalorder %s19, 0
      %p87 = por %p85, %p86
      %p88 = scmp.ne.s32.totalorder %s76, %s77
      %p89 = scmp.eq.s32.totalorder %s20, 3
      %p90 = por %p88, %p89
      %p92 = scmp.ne.s32.totalorder %s77, %s91
      %p93 = scmp.eq.s32.totalorder %s20, 0
      %p94 = por %p92, %p93
      %s96 = sadd.s32 %s95, 1
      %p99 = scmp.eq.s32.totalorder %s14, 3
      %p100 = scmp.ne.s32.totalorder %s95, %s97
      %p101 = scmp.eq.s32.totalorder %s14, 0
      %p102 = por %p100, %p101
      %p103 = scmp.ne.s32.totalorder %s95, %s97
      %p104 = scmp.eq.s32.totalorder %s19, 3
      %p105 = por %p103, %p104
      %p106 = scmp.ne.s32.totalorder %s97, %s98
      %p107 = scmp.eq.s32.totalorder %s19, 0
      %p108 = por %p106, %p107
      %p109 = scmp.ne.s32.totalorder %s97, %s98
      %p110 = scmp.eq.s32.totalorder %s20, 3
      %p111 = por %p109, %p110
      %p113 = scmp.ne.s32.totalorder %s98, %s112
      %p114 = scmp.eq.s32.totalorder %s20, 0
      %p115 = por %p113, %p114
      %s116 = ssub.s32 %s14, %s21
      %p117 = scmp.eq.s32.totalorder %s116, 0
      %s119 = sadd.s32 %s118, 1
      %s120 = scalar_select %p117, %s118, %s119
      %p123 = pneg %p117
      %p124 = scmp.eq.s32.totalorder %s14, 3
      %p125 = por %p123, %p124
      %p126 = scmp.ne.s32.totalorder %s118, %s121
      %p127 = scmp.eq.s32.totalorder %s14, 0
      %p128 = por %p126, %p127
      %p129 = scmp.ne.s32.totalorder %s118, %s121
      %p130 = scmp.eq.s32.totalorder %s19, 3
      %p131 = por %p129, %p130
      %p132 = scmp.ne.s32.totalorder %s121, %s122
      %p133 = scmp.eq.s32.totalorder %s19, 0
      %p134 = por %p132, %p133
      %p135 = scmp.ne.s32.totalorder %s121, %s122
      %p136 = scmp.eq.s32.totalorder %s20, 3
      %p137 = por %p135, %p136
      %p139 = scmp.ne.s32.totalorder %s122, %s138
      %p140 = scmp.eq.s32.totalorder %s20, 0
      %p141 = por %p139, %p140
      %p142 = scmp.le.s32.totalorder 1, %s14
      %p143 = scmp.lt.s32.totalorder %s14, 5
      %p144 = pnand %p142, %p143
      %p145 = pneg %p144
      // Predicated region
      $region9: #{tpu_custom_call.1} parent=5 // pred_check
        _
      $region10: #{tpu_custom_call.1} parent=5 // pred_check_branch
        %147 = sbr.rel (%p144) target = $region12
      $region11: #{tpu_custom_call.1} parent=5 // pred_region
        %s148 = ssub.s32 %s14, 1
        // Predicated region
        $region13: #{tpu_custom_call.1} parent=11 // pred_check
          %p149 = pneg %p87
        $region14: #{tpu_custom_call.1} parent=11 // pred_check_branch
          %151 = sbr.rel (%p149) target = $region16
        $region15: #{tpu_custom_call.1} parent=11 // pred_region
          %s153 = ssub.s32 1152, 1152
          %154 = vsyncadd [#allocation3], %s153
          %s155 = sshll.u32 [#allocation2], 4
          %s156 = int_to_ptr.vmem [resolvable:$true] %s155
          %161 = dma.hbm_to_vmem [thread:$0]  %s2, 1152, %s156, [#allocation3], 576, 576, 36
        $region16: #{tpu_custom_call.1} parent=11 // pred_fallthru
          _
        // Predicated region
        $region17: #{tpu_custom_call.1} parent=11 // pred_check
          %p162 = pneg %p108
        $region18: #{tpu_custom_call.1} parent=11 // pred_check_branch
          %164 = sbr.rel (%p162) target = $region20
        $region19: #{tpu_custom_call.1} parent=11 // pred_region
          _
        $region20: #{tpu_custom_call.1} parent=11 // pred_fallthru
          _
      $region12: #{tpu_custom_call.1} parent=5 // pred_fallthru
        _
      %p165 = scmp.lt.s32.totalorder %s14, 4
      // Predicated region
      $region21: #{tpu_custom_call.1} parent=5 // pred_check
        %p166 = pneg %p165
      $region22: #{tpu_custom_call.1} parent=5 // pred_check_branch
        %168 = sbr.rel (%p166) target = $region24
      $region23: #{tpu_custom_call.1} parent=5 // pred_region
        // Predicated region
        $region25: #{tpu_custom_call.1} parent=23 // pred_check
          %p169 = pneg %p34
        $region26: #{tpu_custom_call.1} parent=23 // pred_check_branch
          %171 = sbr.rel (%p169) target = $region28
        $region27: #{tpu_custom_call.1} parent=23 // pred_region
          %s172 = smul.u32 16, %s14
          %p173 = scmp.lt.s32.totalorder %s172, 63
          %s174 = scalar_select %p173, %s172, 63
          %s175 = smul.addr %s174, 4
          %s176 = scalar_lea.vmem %s0, %s175
          %s177 = smul.u32 16, %s14
        $region28: #{tpu_custom_call.1} parent=23 // pred_fallthru
          _
        // Predicated region
        $region29: #{tpu_custom_call.1} parent=23 // pred_check
          %p178 = pneg %p60
        $region30: #{tpu_custom_call.1} parent=23 // pred_check_branch
          %180 = sbr.rel (%p178) target = $region32
        $region31: #{tpu_custom_call.1} parent=23 // pred_region
          %s181 = smul.u32 16, %s14
          %p182 = scmp.lt.s32.totalorder %s181, 63
          %s183 = scalar_select %p182, %s181, 63
          %s184 = smul.addr %s183, 4
          %s185 = scalar_lea.vmem %s1, %s184
          %s186 = smul.u32 16, %s14
        $region32: #{tpu_custom_call.1} parent=23 // pred_fallthru
          _
      $region24: #{tpu_custom_call.1} parent=5 // pred_fallthru
        _
      %p187 = scmp.le.s32.totalorder 1, %s14
      %p188 = scmp.lt.s32.totalorder %s14, 5
      %p189 = pnand %p187, %p188
      %p190 = pneg %p189
      // Predicated region
      $region33: #{tpu_custom_call.1} parent=5 // pred_check
        _
      $region34: #{tpu_custom_call.1} parent=5 // pred_check_branch
        %192 = sbr.rel (%p189) target = $region36
      $region35: #{tpu_custom_call.1} parent=5 // pred_region
        %s193 = ssub.s32 %s14, 1
        // Predicated region
        $region37: #{tpu_custom_call.1} parent=35 // pred_check
          %p194 = pneg %p87
        $region38: #{tpu_custom_call.1} parent=35 // pred_check_branch
          %196 = sbr.rel (%p194) target = $region40
        $region39: #{tpu_custom_call.1} parent=35 // pred_region
          %197 = dma.done [#allocation3], 1152
        $region40: #{tpu_custom_call.1} parent=35 // pred_fallthru
          _
        %s198 = smul.u32 16, %s19
        %p199 = scmp.lt.s32.totalorder %s198, 63
        %s200 = scalar_select %p199, %s198, 63
        %s201 = smul.addr %s200, 4
        %s202 = scalar_lea.vmem %s0, %s201
        %p203 = pneg %p40
        %p204 = pneg %p37
        %s205 = smul.u32 16, %s19
        %p206 = scmp.lt.s32.totalorder %s205, 63
        %s207 = scalar_select %p206, %s205, 63
        %s208 = smul.addr %s207, 4
        %s209 = scalar_lea.vmem %s1, %s208
        %p210 = pneg %p66
        %p211 = pneg %p63
        %p212 = pneg %p87
        %p213 = pneg %p84
        %p214 = pneg %p108
        %p215 = pneg %p105
        %p216 = pneg %p134
        %p217 = pneg %p131
        %s218 = sand.u32 %s121, 1
        %s219 = scalar_lea.sflag [#allocation4], %s218
        %s220 = sand.u32 %s121, 1
        %s221 = smul.addr %s220, 128
        %s222 = scalar_lea.vmem [#allocation5], %s221
        %s223 = smul.u32 16, %s19
        %p224 = scmp.lt.s32.totalorder %s223, 63
        %s225 = scalar_select %p224, %s223, 63
        %s226 = smul.addr %s225, 4
        %s227 = scalar_lea.vmem %s0, %s226
        %s228 = smul.u32 16, %s19
        %s229 = smul.u32 16, %s19
        %p230 = scmp.lt.s32.totalorder %s229, 63
        %s231 = scalar_select %p230, %s229, 63
        %s232 = smul.addr %s231, 4
        %s233 = scalar_lea.vmem %s1, %s232
        %s234 = smul.u32 16, %s19
        %s235 = smul.u32 16, %s19
        %v237 = vld [vmem:[%s233] sm:$0xf]
        %v238 = vld [vmem:[%s233 + $0x4] sm:$0xf]
        %v239 = vld [vmem:[%s233 + $0x8] sm:$0xf]
        %v240 = vld [vmem:[%s233 + $0xc] sm:$0xf]
        %v241 = vld [vmem:[%s233 + $0x10] sm:$0xf]
        %v242 = vld [vmem:[%s233 + $0x14] sm:$0xf]
        %v243 = vld [vmem:[%s233 + $0x18] sm:$0xf]
        %v244 = vld [vmem:[%s233 + $0x1c] sm:$0xf]
        %v245 = vld [vmem:[%s233 + $0x20] sm:$0xf]
        %v246 = vld [vmem:[%s233 + $0x24] sm:$0xf]
        %v247 = vld [vmem:[%s233 + $0x28] sm:$0xf]
        %v248 = vld [vmem:[%s233 + $0x2c] sm:$0xf]
        %v249 = vld [vmem:[%s233 + $0x30] sm:$0xf]
        %v250 = vld [vmem:[%s233 + $0x34] sm:$0xf]
        %v251 = vld [vmem:[%s233 + $0x38] sm:$0xf]
        %v252 = vld [vmem:[%s233 + $0x3c] sm:$0xf]
        %v253 = vld [vmem:[%s227] sm:$0xf]
        %v254 = vld [vmem:[%s227 + $0x4] sm:$0xf]
        %v255 = vld [vmem:[%s227 + $0x8] sm:$0xf]
        %v256 = vld [vmem:[%s227 + $0xc] sm:$0xf]
        %v257 = vld [vmem:[%s227 + $0x10] sm:$0xf]
        %v258 = vld [vmem:[%s227 + $0x14] sm:$0xf]
        %v259 = vld [vmem:[%s227 + $0x18] sm:$0xf]
        %v260 = vld [vmem:[%s227 + $0x1c] sm:$0xf]
        %v261 = vld [vmem:[%s227 + $0x20] sm:$0xf]
        %v262 = vld [vmem:[%s227 + $0x24] sm:$0xf]
        %v263 = vld [vmem:[%s227 + $0x28] sm:$0xf]
        %v264 = vld [vmem:[%s227 + $0x2c] sm:$0xf]
        %v265 = vld [vmem:[%s227 + $0x30] sm:$0xf]
        %v266 = vld [vmem:[%s227 + $0x34] sm:$0xf]
        %v267 = vld [vmem:[%s227 + $0x38] sm:$0xf]
        %v268 = vld [vmem:[%s227 + $0x3c] sm:$0xf]
        %v269 = vld [vmem:[#allocation2] sm:$0xf]
        %v270 = vld [vmem:[#allocation2 + $0x24] sm:$0xf]
        %v287 = vunpack.c.l.b16 %v253
        %v288 = vunpack.c.l.b16 %v254
        %v289 = vunpack.c.l.b16 %v255
        %v290 = vunpack.c.l.b16 %v256
        %v291 = vunpack.c.l.b16 %v257
        %v292 = vunpack.c.l.b16 %v258
        %v293 = vunpack.c.l.b16 %v259
        %v294 = vunpack.c.l.b16 %v260
        %v295 = vunpack.c.l.b16 %v261
        %v296 = vunpack.c.l.b16 %v262
        %v297 = vunpack.c.l.b16 %v263
        %v298 = vunpack.c.l.b16 %v264
        %v299 = vunpack.c.l.b16 %v265
        %v300 = vunpack.c.l.b16 %v266
        %v301 = vunpack.c.l.b16 %v267
        %v302 = vunpack.c.l.b16 %v268
        %v303 = vpack.c.b16 %v288, %v287
        %v304 = vpack.c.b16 %v290, %v289
        %v305 = vpack.c.b16 %v292, %v291
        %v306 = vpack.c.b16 %v294, %v293
        %v307 = vpack.c.b16 %v296, %v295
        %v308 = vpack.c.b16 %v298, %v297
        %v309 = vpack.c.b16 %v300, %v299
        %v310 = vpack.c.b16 %v302, %v301
        %v313 = vunpack.c.l.b16 %v269
        %v314 = vunpack.c.l.b16 %v270
        %v315 = vpack.c.b16 %v314, %v313
        %vm317 = vcmask 130048
        %v319 = vsel %vm317, %v303, 0
        %v322 = vsel %vm317, %v304, 0
        %v325 = vsel %vm317, %v305, 0
        %v328 = vsel %vm317, %v306, 0
        %v331 = vsel %vm317, %v307, 0
        %v334 = vsel %vm317, %v308, 0
        %v337 = vsel %vm317, %v309, 0
        %v340 = vsel %vm317, %v310, 0
        %342 = vmatprep.subr.bf16.mxu0 0
        %343 = vmatpush1.bf16.msra.mxu0 %v315
        %344 = vmatprep.subr.bf16.mxu0 0
        %345 = vmatpush1.bf16.msra.mxu0 0
        %346 = vmatprep.subr.bf16.mxu0 0
        %347 = vmatpush1.bf16.msra.mxu0 0
        %348 = vmatprep.subr.bf16.mxu0 0
        %349 = vmatpush1.bf16.msra.mxu0 0
        %350 = vmatprep.subr.bf16.mxu0 0
        %351 = vmatpush1.bf16.msra.mxu0 0
        %352 = vmatprep.subr.bf16.mxu0 0
        %353 = vmatpush1.bf16.msra.mxu0 0
        %354 = vmatprep.subr.bf16.mxu0 0
        %355 = vmatpush1.bf16.msra.mxu0 0
        %356 = vmatprep.subr.bf16.mxu0 0
        %357 = vmatpush1.bf16.msra.mxu0 0
        %358 = vmatprep.subr.bf16.mxu0 0
        %359 = vmatpush1.bf16.msra.mxu0 0
        %360 = vmatprep.subr.bf16.mxu0 0
        %361 = vmatpush1.bf16.msra.mxu0 0
        %362 = vmatprep.subr.bf16.mxu0 0
        %363 = vmatpush1.bf16.msra.mxu0 0
        %364 = vmatprep.subr.bf16.mxu0 0
        %365 = vmatpush1.bf16.msra.mxu0 0
        %366 = vmatprep.subr.bf16.mxu0 0
        %367 = vmatpush1.bf16.msra.mxu0 0
        %368 = vmatprep.subr.bf16.mxu0 0
        %369 = vmatpush1.bf16.msra.mxu0 0
        %370 = vmatprep.subr.bf16.mxu0 0
        %371 = vmatpush1.bf16.msra.mxu0 0
        %372 = vmatprep.subr.bf16.mxu0 0
        %373 = vmatpush1.bf16.msra.mxu0 0
        %374 = vmatprep.mubr.bf16.mxu0 0
        %375 = vmatmul.mubr.bf16.gmra.mrb[0].mxu0 %v319
        %v376 = vpop.f32.mrb[0].mxu0
        %v377 = vadd.f32 0.0, %v376
        %v378 = vpop.f32.mrb[0].mxu0
        %v379 = vpop.f32.mrb[0].mxu0
        %v380 = vadd.f32 0.0, %v379
        %v381 = vpop.f32.mrb[0].mxu0
        %382 = vmatprep.mubr.bf16.mxu0 0
        %383 = vmatmul.mubr.bf16.gmra.mrb[0].mxu0 %v322
        %v384 = vpop.f32.mrb[0].mxu0
        %v385 = vadd.f32 0.0, %v384
        %v386 = vpop.f32.mrb[0].mxu0
        %v387 = vpop.f32.mrb[0].mxu0
        %v388 = vadd.f32 0.0, %v387
        %v389 = vpop.f32.mrb[0].mxu0
        %390 = vmatprep.mubr.bf16.mxu0 0
        %391 = vmatmul.mubr.bf16.gmra.mrb[0].mxu0 %v325
        %v392 = vpop.f32.mrb[0].mxu0
        %v393 = vadd.f32 0.0, %v392
        %v394 = vpop.f32.mrb[0].mxu0
        %v395 = vpop.f32.mrb[0].mxu0
        %v396 = vadd.f32 0.0, %v395
        %v397 = vpop.f32.mrb[0].mxu0
        %398 = vmatprep.mubr.bf16.mxu0 0
        %399 = vmatmul.mubr.bf16.gmra.mrb[0].mxu0 %v328
        %v400 = vpop.f32.mrb[0].mxu0
        %v401 = vadd.f32 0.0, %v400
        %v402 = vpop.f32.mrb[0].mxu0
        %v403 = vpop.f32.mrb[0].mxu0
        %v404 = vadd.f32 0.0, %v403
        %v405 = vpop.f32.mrb[0].mxu0
        %406 = vmatprep.mubr.bf16.mxu0 0
        %407 = vmatmul.mubr.bf16.gmra.mrb[0].mxu0 %v331
        %v408 = vpop.f32.mrb[0].mxu0
        %v409 = vadd.f32 0.0, %v408
        %v410 = vpop.f32.mrb[0].mxu0
        %v411 = vpop.f32.mrb[0].mxu0
        %v412 = vadd.f32 0.0, %v411
        %v413 = vpop.f32.mrb[0].mxu0
        %414 = vmatprep.mubr.bf16.mxu0 0
        %415 = vmatmul.mubr.bf16.gmra.mrb[0].mxu0 %v334
        %v416 = vpop.f32.mrb[0].mxu0
        %v417 = vadd.f32 0.0, %v416
        %v418 = vpop.f32.mrb[0].mxu0
        %v419 = vpop.f32.mrb[0].mxu0
        %v420 = vadd.f32 0.0, %v419
        %v421 = vpop.f32.mrb[0].mxu0
        %422 = vmatprep.mubr.bf16.mxu0 0
        %423 = vmatmul.mubr.bf16.gmra.mrb[0].mxu0 %v337
        %v424 = vpop.f32.mrb[0].mxu0
        %v425 = vadd.f32 0.0, %v424
        %v426 = vpop.f32.mrb[0].mxu0
        %v427 = vpop.f32.mrb[0].mxu0
        %v428 = vadd.f32 0.0, %v427
        %v429 = vpop.f32.mrb[0].mxu0
        %430 = vmatprep.mubr.bf16.mxu0 0
        %431 = vmatmul.mubr.bf16.gmra.mrb[0].mxu0 %v340
        %v432 = vpop.f32.mrb[0].mxu0
        %v433 = vadd.f32 0.0, %v432
        %v434 = vpop.f32.mrb[0].mxu0
        %v435 = vpop.f32.mrb[0].mxu0
        %v436 = vadd.f32 0.0, %v435
        %v437 = vpop.f32.mrb[0].mxu0
        %438 = vdwg.mxu0
        %v439 = vpack.c.bf16 %v380, %v377
        %v440 = vpack.c.bf16 %v388, %v385
        %v441 = vpack.c.bf16 %v396, %v393
        %v442 = vpack.c.bf16 %v404, %v401
        %v443 = vpack.c.bf16 %v412, %v409
        %v444 = vpack.c.bf16 %v420, %v417
        %v445 = vpack.c.bf16 %v428, %v425
        %v446 = vpack.c.bf16 %v436, %v433
        %v447 = vld [vmem:[%s3] sm:$0x1]
        %v449 = vlaneseq
        %v450 = vshrl.u32 %v449, 7
        %v451 = vsub.s32 0, %v450
        %v452 = vrot.slane %v447, %v451
        %v470 = vunpack.c.l.b16 %v237
        %v471 = vunpack.c.l.b16 %v238
        %v472 = vunpack.c.l.b16 %v239
        %v473 = vunpack.c.l.b16 %v240
        %v474 = vunpack.c.l.b16 %v241
        %v475 = vunpack.c.l.b16 %v242
        %v476 = vunpack.c.l.b16 %v243
        %v477 = vunpack.c.l.b16 %v244
        %v478 = vunpack.c.l.b16 %v245
        %v479 = vunpack.c.l.b16 %v246
        %v480 = vunpack.c.l.b16 %v247
        %v481 = vunpack.c.l.b16 %v248
        %v482 = vunpack.c.l.b16 %v249
        %v483 = vunpack.c.l.b16 %v250
        %v484 = vunpack.c.l.b16 %v251
        %v485 = vunpack.c.l.b16 %v252
        %v486 = vpack.c.b16 %v471, %v470
        %v487 = vpack.c.b16 %v473, %v472
        %v488 = vpack.c.b16 %v475, %v474
        %v489 = vpack.c.b16 %v477, %v476
        %v490 = vpack.c.b16 %v479, %v478
        %v491 = vpack.c.b16 %v481, %v480
        %v492 = vpack.c.b16 %v483, %v482
        %v493 = vpack.c.b16 %v485, %v484
        %502 = vmatprep.subr.bf16.mxu0 0
        %503 = vmatpush1.bf16.msra.mxu0 %v439
        %504 = vmatprep.subr.bf16.mxu0 0
        %505 = vmatpush1.bf16.msra.mxu0 %v440
        %506 = vmatprep.subr.bf16.mxu0 0
        %507 = vmatpush1.bf16.msra.mxu0 %v441
        %508 = vmatprep.subr.bf16.mxu0 0
        %509 = vmatpush1.bf16.msra.mxu0 %v442
        %510 = vmatprep.subr.bf16.mxu0 0
        %511 = vmatpush1.bf16.msra.mxu0 %v443
        %512 = vmatprep.subr.bf16.mxu0 0
        %513 = vmatpush1.bf16.msra.mxu0 %v444
        %514 = vmatprep.subr.bf16.mxu0 0
        %515 = vmatpush1.bf16.msra.mxu0 %v445
        %516 = vmatprep.subr.bf16.mxu0 0
        %517 = vmatpush1.bf16.msra.mxu0 %v446
        %518 = vmatprep.subr.bf16.mxu0 0
        %519 = vmatpush1.bf16.msra.mxu0 0
        %520 = vmatprep.subr.bf16.mxu0 0
        %521 = vmatpush1.bf16.msra.mxu0 0
        %522 = vmatprep.subr.bf16.mxu0 0
        %523 = vmatpush1.bf16.msra.mxu0 0
        %524 = vmatprep.subr.bf16.mxu0 0
        %525 = vmatpush1.bf16.msra.mxu0 0
        %526 = vmatprep.subr.bf16.mxu0 0
        %527 = vmatpush1.bf16.msra.mxu0 0
        %528 = vmatprep.subr.bf16.mxu0 0
        %529 = vmatpush1.bf16.msra.mxu0 0
        %530 = vmatprep.subr.bf16.mxu0 0
        %531 = vmatpush1.bf16.msra.mxu0 0
        %532 = vmatprep.subr.bf16.mxu0 0
        %533 = vmatpush1.bf16.msra.mxu0 0
        %534 = vmatprep.mubr.bf16.mxu0 0
        %535 = vmatmul.mubr.bf16.gmra.mrb[0].mxu0 %v486
        %v536 = vpop.f32.mrb[0].mxu0
        %v537 = vadd.f32 %v452, %v536
        %v538 = vpop.f32.mrb[0].mxu0
        %v539 = vpop.f32.mrb[0].mxu0
        %v540 = vadd.f32 %v452, %v539
        %v541 = vpop.f32.mrb[0].mxu0
        %542 = vmatprep.mubr.bf16.mxu0 0
        %543 = vmatmul.mubr.bf16.gmra.mrb[0].mxu0 %v487
        %v544 = vpop.f32.mrb[0].mxu0
        %v545 = vadd.f32 %v452, %v544
        %v546 = vpop.f32.mrb[0].mxu0
        %v547 = vpop.f32.mrb[0].mxu0
        %v548 = vadd.f32 %v452, %v547
        %v549 = vpop.f32.mrb[0].mxu0
        %550 = vmatprep.mubr.bf16.mxu0 0
        %551 = vmatmul.mubr.bf16.gmra.mrb[0].mxu0 %v488
        %v552 = vpop.f32.mrb[0].mxu0
        %v553 = vadd.f32 %v452, %v552
        %v554 = vpop.f32.mrb[0].mxu0
        %v555 = vpop.f32.mrb[0].mxu0
        %v556 = vadd.f32 %v452, %v555
        %v557 = vpop.f32.mrb[0].mxu0
        %558 = vmatprep.mubr.bf16.mxu0 0
        %559 = vmatmul.mubr.bf16.gmra.mrb[0].mxu0 %v489
        %v560 = vpop.f32.mrb[0].mxu0
        %v561 = vadd.f32 %v452, %v560
        %v562 = vpop.f32.mrb[0].mxu0
        %v563 = vpop.f32.mrb[0].mxu0
        %v564 = vadd.f32 %v452, %v563
        %v565 = vpop.f32.mrb[0].mxu0
        %566 = vmatprep.mubr.bf16.mxu0 0
        %567 = vmatmul.mubr.bf16.gmra.mrb[0].mxu0 %v490
        %v568 = vpop.f32.mrb[0].mxu0
        %v569 = vadd.f32 %v452, %v568
        %v570 = vpop.f32.mrb[0].mxu0
        %v571 = vpop.f32.mrb[0].mxu0
        %v572 = vadd.f32 %v452, %v571
        %v573 = vpop.f32.mrb[0].mxu0
        %574 = vmatprep.mubr.bf16.mxu0 0
        %575 = vmatmul.mubr.bf16.gmra.mrb[0].mxu0 %v491
        %v576 = vpop.f32.mrb[0].mxu0
        %v577 = vadd.f32 %v452, %v576
        %v578 = vpop.f32.mrb[0].mxu0
        %v579 = vpop.f32.mrb[0].mxu0
        %v580 = vadd.f32 %v452, %v579
        %v581 = vpop.f32.mrb[0].mxu0
        %582 = vmatprep.mubr.bf16.mxu0 0
        %583 = vmatmul.mubr.bf16.gmra.mrb[0].mxu0 %v492
        %v584 = vpop.f32.mrb[0].mxu0
        %v585 = vadd.f32 %v452, %v584
        %v586 = vpop.f32.mrb[0].mxu0
        %v587 = vpop.f32.mrb[0].mxu0
        %v588 = vadd.f32 %v452, %v587
        %v589 = vpop.f32.mrb[0].mxu0
        %590 = vmatprep.mubr.bf16.mxu0 0
        %591 = vmatmul.mubr.bf16.gmra.mrb[0].mxu0 %v493
        %v592 = vpop.f32.mrb[0].mxu0
        %v593 = vadd.f32 %v452, %v592
        %v594 = vpop.f32.mrb[0].mxu0
        %v595 = vpop.f32.mrb[0].mxu0
        %v596 = vadd.f32 %v452, %v595
        %v597 = vpop.f32.mrb[0].mxu0
        %598 = vdwg.mxu0
        %v599 = vmax.f32 %v537, 0.0
        %v600 = vmax.f32 %v540, 0.0
        %v601 = vmax.f32 %v545, 0.0
        %v602 = vmax.f32 %v548, 0.0
        %v603 = vmax.f32 %v553, 0.0
        %v604 = vmax.f32 %v556, 0.0
        %v605 = vmax.f32 %v561, 0.0
        %v606 = vmax.f32 %v564, 0.0
        %v607 = vmax.f32 %v569, 0.0
        %v608 = vmax.f32 %v572, 0.0
        %v609 = vmax.f32 %v577, 0.0
        %v610 = vmax.f32 %v580, 0.0
        %v611 = vmax.f32 %v585, 0.0
        %v612 = vmax.f32 %v588, 0.0
        %v613 = vmax.f32 %v593, 0.0
        %v614 = vmax.f32 %v596, 0.0
        %v615 = vpack.c.bf16 %v600, %v599
        %v616 = vpack.c.bf16 %v602, %v601
        %v617 = vpack.c.bf16 %v604, %v603
        %v618 = vpack.c.bf16 %v606, %v605
        %v619 = vpack.c.bf16 %v608, %v607
        %v620 = vpack.c.bf16 %v610, %v609
        %v621 = vpack.c.bf16 %v612, %v611
        %v622 = vpack.c.bf16 %v614, %v613
        %v623 = vld [vmem:[#allocation2 + $0x4] sm:$0xf]
        %v624 = vld [vmem:[#allocation2 + $0x28] sm:$0xf]
        %v627 = vunpack.c.l.b16 %v623
        %v628 = vunpack.c.l.b16 %v624
        %v629 = vpack.c.b16 %v628, %v627
        %v632 = vsel %vm317, %v615, 0
        %v635 = vsel %vm317, %v616, 0
        %v638 = vsel %vm317, %v617, 0
        %v641 = vsel %vm317, %v618, 0
        %v644 = vsel %vm317, %v619, 0
        %v647 = vsel %vm317, %v620, 0
        %v650 = vsel %vm317, %v621, 0
        %v653 = vsel %vm317, %v622, 0
        %655 = vmatprep.subr.bf16.mxu0 0
        %656 = vmatpush1.bf16.msra.mxu0 %v629
        %657 = vmatprep.subr.bf16.mxu0 0
        %658 = vmatpush1.bf16.msra.mxu0 0
        %659 = vmatprep.subr.bf16.mxu0 0
        %660 = vmatpush1.bf16.msra.mxu0 0
        %661 = vmatprep.subr.bf16.mxu0 0
        %662 = vmatpush1.bf16.msra.mxu0 0
        %663 = vmatprep.subr.bf16.mxu0 0
        %664 = vmatpush1.bf16.msra.mxu0 0
        %665 = vmatprep.subr.bf16.mxu0 0
        %666 = vmatpush1.bf16.msra.mxu0 0
        %667 = vmatprep.subr.bf16.mxu0 0
        %668 = vmatpush1.bf16.msra.mxu0 0
        %669 = vmatprep.subr.bf16.mxu0 0
        %670 = vmatpush1.bf16.msra.mxu0 0
        %671 = vmatprep.subr.bf16.mxu0 0
        %672 = vmatpush1.bf16.msra.mxu0 0
        %673 = vmatprep.subr.bf16.mxu0 0
        %674 = vmatpush1.bf16.msra.mxu0 0
        %675 = vmatprep.subr.bf16.mxu0 0
        %676 = vmatpush1.bf16.msra.mxu0 0
        %677 = vmatprep.subr.bf16.mxu0 0
        %678 = vmatpush1.bf16.msra.mxu0 0
        %679 = vmatprep.subr.bf16.mxu0 0
        %680 = vmatpush1.bf16.msra.mxu0 0
        %681 = vmatprep.subr.bf16.mxu0 0
        %682 = vmatpush1.bf16.msra.mxu0 0
        %683 = vmatprep.subr.bf16.mxu0 0
        %684 = vmatpush1.bf16.msra.mxu0 0
        %685 = vmatprep.subr.bf16.mxu0 0
        %686 = vmatpush1.bf16.msra.mxu0 0
        %687 = vmatprep.mubr.bf16.mxu0 0
        %688 = vmatmul.mubr.bf16.gmra.mrb[0].mxu0 %v632
        %v689 = vpop.f32.mrb[0].mxu0
        %v690 = vadd.f32 0.0, %v689
        %v691 = vpop.f32.mrb[0].mxu0
        %v692 = vpop.f32.mrb[0].mxu0
        %v693 = vadd.f32 0.0, %v692
        %v694 = vpop.f32.mrb[0].mxu0
        %695 = vmatprep.mubr.bf16.mxu0 0
        %696 = vmatmul.mubr.bf16.gmra.mrb[0].mxu0 %v635
        %v697 = vpop.f32.mrb[0].mxu0
        %v698 = vadd.f32 0.0, %v697
        %v699 = vpop.f32.mrb[0].mxu0
        %v700 = vpop.f32.mrb[0].mxu0
        %v701 = vadd.f32 0.0, %v700
        %v702 = vpop.f32.mrb[0].mxu0
        %703 = vmatprep.mubr.bf16.mxu0 0
        %704 = vmatmul.mubr.bf16.gmra.mrb[0].mxu0 %v638
        %v705 = vpop.f32.mrb[0].mxu0
        %v706 = vadd.f32 0.0, %v705
        %v707 = vpop.f32.mrb[0].mxu0
        %v708 = vpop.f32.mrb[0].mxu0
        %v709 = vadd.f32 0.0, %v708
        %v710 = vpop.f32.mrb[0].mxu0
        %711 = vmatprep.mubr.bf16.mxu0 0
        %712 = vmatmul.mubr.bf16.gmra.mrb[0].mxu0 %v641
        %v713 = vpop.f32.mrb[0].mxu0
        %v714 = vadd.f32 0.0, %v713
        %v715 = vpop.f32.mrb[0].mxu0
        %v716 = vpop.f32.mrb[0].mxu0
        %v717 = vadd.f32 0.0, %v716
        %v718 = vpop.f32.mrb[0].mxu0
        %719 = vmatprep.mubr.bf16.mxu0 0
        %720 = vmatmul.mubr.bf16.gmra.mrb[0].mxu0 %v644
        %v721 = vpop.f32.mrb[0].mxu0
        %v722 = vadd.f32 0.0, %v721
        %v723 = vpop.f32.mrb[0].mxu0
        %v724 = vpop.f32.mrb[0].mxu0
        %v725 = vadd.f32 0.0, %v724
        %v726 = vpop.f32.mrb[0].mxu0
        %727 = vmatprep.mubr.bf16.mxu0 0
        %728 = vmatmul.mubr.bf16.gmra.mrb[0].mxu0 %v647
        %v729 = vpop.f32.mrb[0].mxu0
        %v730 = vadd.f32 0.0, %v729
        %v731 = vpop.f32.mrb[0].mxu0
        %v732 = vpop.f32.mrb[0].mxu0
        %v733 = vadd.f32 0.0, %v732
        %v734 = vpop.f32.mrb[0].mxu0
        %735 = vmatprep.mubr.bf16.mxu0 0
        %736 = vmatmul.mubr.bf16.gmra.mrb[0].mxu0 %v650
        %v737 = vpop.f32.mrb[0].mxu0
        %v738 = vadd.f32 0.0, %v737
        %v739 = vpop.f32.mrb[0].mxu0
        %v740 = vpop.f32.mrb[0].mxu0
        %v741 = vadd.f32 0.0, %v740
        %v742 = vpop.f32.mrb[0].mxu0
        %743 = vmatprep.mubr.bf16.mxu0 0
        %744 = vmatmul.mubr.bf16.gmra.mrb[0].mxu0 %v653
        %v745 = vpop.f32.mrb[0].mxu0
        %v746 = vadd.f32 0.0, %v745
        %v747 = vpop.f32.mrb[0].mxu0
        %v748 = vpop.f32.mrb[0].mxu0
        %v749 = vadd.f32 0.0, %v748
        %v750 = vpop.f32.mrb[0].mxu0
        %751 = vdwg.mxu0
        %v752 = vpack.c.bf16 %v693, %v690
        %v753 = vpack.c.bf16 %v701, %v698
        %v754 = vpack.c.bf16 %v709, %v706
        %v755 = vpack.c.bf16 %v717, %v714
        %v756 = vpack.c.bf16 %v725, %v722
        %v757 = vpack.c.bf16 %v733, %v730
        %v758 = vpack.c.bf16 %v741, %v738
        %v759 = vpack.c.bf16 %v749, %v746
        %v760 = vld [vmem:[%s3 + $0x1] sm:$0x1]
        %v762 = vlaneseq
        %v763 = vshrl.u32 %v762, 7
        %v764 = vsub.s32 0, %v763
        %v765 = vrot.slane %v760, %v764
        %767 = vmatprep.subr.bf16.mxu0 0
        %768 = vmatpush1.bf16.msra.mxu0 %v752
        %769 = vmatprep.subr.bf16.mxu0 0
        %770 = vmatpush1.bf16.msra.mxu0 %v753
        %771 = vmatprep.subr.bf16.mxu0 0
        %772 = vmatpush1.bf16.msra.mxu0 %v754
        %773 = vmatprep.subr.bf16.mxu0 0
        %774 = vmatpush1.bf16.msra.mxu0 %v755
        %775 = vmatprep.subr.bf16.mxu0 0
        %776 = vmatpush1.bf16.msra.mxu0 %v756
        %777 = vmatprep.subr.bf16.mxu0 0
        %778 = vmatpush1.bf16.msra.mxu0 %v757
        %779 = vmatprep.subr.bf16.mxu0 0
        %780 = vmatpush1.bf16.msra.mxu0 %v758
        %781 = vmatprep.subr.bf16.mxu0 0
        %782 = vmatpush1.bf16.msra.mxu0 %v759
        %783 = vmatprep.subr.bf16.mxu0 0
        %784 = vmatpush1.bf16.msra.mxu0 0
        %785 = vmatprep.subr.bf16.mxu0 0
        %786 = vmatpush1.bf16.msra.mxu0 0
        %787 = vmatprep.subr.bf16.mxu0 0
        %788 = vmatpush1.bf16.msra.mxu0 0
        %789 = vmatprep.subr.bf16.mxu0 0
        %790 = vmatpush1.bf16.msra.mxu0 0
        %791 = vmatprep.subr.bf16.mxu0 0
        %792 = vmatpush1.bf16.msra.mxu0 0
        %793 = vmatprep.subr.bf16.mxu0 0
        %794 = vmatpush1.bf16.msra.mxu0 0
        %795 = vmatprep.subr.bf16.mxu0 0
        %796 = vmatpush1.bf16.msra.mxu0 0
        %797 = vmatprep.subr.bf16.mxu0 0
        %798 = vmatpush1.bf16.msra.mxu0 0
        %799 = vmatprep.mubr.bf16.mxu0 0
        %800 = vmatmul.mubr.bf16.gmra.mrb[0].mxu0 %v486
        %v801 = vpop.f32.mrb[0].mxu0
        %v802 = vadd.f32 %v765, %v801
        %v803 = vpop.f32.mrb[0].mxu0
        %v804 = vpop.f32.mrb[0].mxu0
        %v805 = vadd.f32 %v765, %v804
        %v806 = vpop.f32.mrb[0].mxu0
        %807 = vmatprep.mubr.bf16.mxu0 0
        %808 = vmatmul.mubr.bf16.gmra.mrb[0].mxu0 %v487
        %v809 = vpop.f32.mrb[0].mxu0
        %v810 = vadd.f32 %v765, %v809
        %v811 = vpop.f32.mrb[0].mxu0
        %v812 = vpop.f32.mrb[0].mxu0
        %v813 = vadd.f32 %v765, %v812
        %v814 = vpop.f32.mrb[0].mxu0
        %815 = vmatprep.mubr.bf16.mxu0 0
        %816 = vmatmul.mubr.bf16.gmra.mrb[0].mxu0 %v488
        %v817 = vpop.f32.mrb[0].mxu0
        %v818 = vadd.f32 %v765, %v817
        %v819 = vpop.f32.mrb[0].mxu0
        %v820 = vpop.f32.mrb[0].mxu0
        %v821 = vadd.f32 %v765, %v820
        %v822 = vpop.f32.mrb[0].mxu0
        %823 = vmatprep.mubr.bf16.mxu0 0
        %824 = vmatmul.mubr.bf16.gmra.mrb[0].mxu0 %v489
        %v825 = vpop.f32.mrb[0].mxu0
        %v826 = vadd.f32 %v765, %v825
        %v827 = vpop.f32.mrb[0].mxu0
        %v828 = vpop.f32.mrb[0].mxu0
        %v829 = vadd.f32 %v765, %v828
        %v830 = vpop.f32.mrb[0].mxu0
        %831 = vmatprep.mubr.bf16.mxu0 0
        %832 = vmatmul.mubr.bf16.gmra.mrb[0].mxu0 %v490
        %v833 = vpop.f32.mrb[0].mxu0
        %v834 = vadd.f32 %v765, %v833
        %v835 = vpop.f32.mrb[0].mxu0
        %v836 = vpop.f32.mrb[0].mxu0
        %v837 = vadd.f32 %v765, %v836
        %v838 = vpop.f32.mrb[0].mxu0
        %839 = vmatprep.mubr.bf16.mxu0 0
        %840 = vmatmul.mubr.bf16.gmra.mrb[0].mxu0 %v491
        %v841 = vpop.f32.mrb[0].mxu0
        %v842 = vadd.f32 %v765, %v841
        %v843 = vpop.f32.mrb[0].mxu0
        %v844 = vpop.f32.mrb[0].mxu0
        %v845 = vadd.f32 %v765, %v844
        %v846 = vpop.f32.mrb[0].mxu0
        %847 = vmatprep.mubr.bf16.mxu0 0
        %848 = vmatmul.mubr.bf16.gmra.mrb[0].mxu0 %v492
        %v849 = vpop.f32.mrb[0].mxu0
        %v850 = vadd.f32 %v765, %v849
        %v851 = vpop.f32.mrb[0].mxu0
        %v852 = vpop.f32.mrb[0].mxu0
        %v853 = vadd.f32 %v765, %v852
        %v854 = vpop.f32.mrb[0].mxu0
        %855 = vmatprep.mubr.bf16.mxu0 0
        %856 = vmatmul.mubr.bf16.gmra.mrb[0].mxu0 %v493
        %v857 = vpop.f32.mrb[0].mxu0
        %v858 = vadd.f32 %v765, %v857
        %v859 = vpop.f32.mrb[0].mxu0
        %v860 = vpop.f32.mrb[0].mxu0
        %v861 = vadd.f32 %v765, %v860
        %v862 = vpop.f32.mrb[0].mxu0
        %863 = vdwg.mxu0
        %v864 = vmax.f32 %v802, 0.0
        %v865 = vmax.f32 %v805, 0.0
        %v866 = vmax.f32 %v810, 0.0
        %v867 = vmax.f32 %v813, 0.0
        %v868 = vmax.f32 %v818, 0.0
        %v869 = vmax.f32 %v821, 0.0
        %v870 = vmax.f32 %v826, 0.0
        %v871 = vmax.f32 %v829, 0.0
        %v872 = vmax.f32 %v834, 0.0
        %v873 = vmax.f32 %v837, 0.0
        %v874 = vmax.f32 %v842, 0.0
        %v875 = vmax.f32 %v845, 0.0
        %v876 = vmax.f32 %v850, 0.0
        %v877 = vmax.f32 %v853, 0.0
        %v878 = vmax.f32 %v858, 0.0
        %v879 = vmax.f32 %v861, 0.0
        %v880 = vpack.c.bf16 %v865, %v864
        %v881 = vpack.c.bf16 %v867, %v866
        %v882 = vpack.c.bf16 %v869, %v868
        %v883 = vpack.c.bf16 %v871, %v870
        %v884 = vpack.c.bf16 %v873, %v872
        %v885 = vpack.c.bf16 %v875, %v874
        %v886 = vpack.c.bf16 %v877, %v876
        %v887 = vpack.c.bf16 %v879, %v878
        %v888 = vld [vmem:[#allocation2 + $0x8] sm:$0xff]
        %v889 = vld [vmem:[#allocation2 + $0x10] sm:$0xf]
        %v890 = vld [vmem:[#allocation2 + $0x2c] sm:$0xff]
        %v891 = vld [vmem:[#allocation2 + $0x34] sm:$0xf]
        %v892 = vld [vmem:[%s3 + $0x2] sm:$0x7]
        %v894 = vlaneseq
        %v895 = vshrl.u32 %v894, 7
        %v896 = vsub.s32 0, %v895
        %v897 = vrot.slane %v892, %v896
        %v898 = vlaneseq
        %v899 = vshrl.u32 %v898, 7
        %v900 = vsub.s32 1, %v899
        %v901 = vrot.slane %v892, %v900
        %v902 = vlaneseq
        %v903 = vshrl.u32 %v902, 7
        %v904 = vsub.s32 2, %v903
        %v905 = vrot.slane %v892, %v904
        %v913 = vunpack.c.l.b16 %v888
        %v914 = vunpack.c.h.b16 %v888
        %v915 = vunpack.c.l.b16 %v889
        %v916 = vunpack.c.l.b16 %v890
        %v917 = vunpack.c.h.b16 %v890
        %v918 = vunpack.c.l.b16 %v891
        %v919 = vpack.c.b16 %v916, %v913
        %v920 = vpack.c.b16 %v917, %v914
        %v921 = vpack.c.b16 %v918, %v915
        %v926 = vsel %vm317, %v880, 0
        %v929 = vsel %vm317, %v881, 0
        %v932 = vsel %vm317, %v882, 0
        %v935 = vsel %vm317, %v883, 0
        %v938 = vsel %vm317, %v884, 0
        %v941 = vsel %vm317, %v885, 0
        %v944 = vsel %vm317, %v886, 0
        %v947 = vsel %vm317, %v887, 0
        %949 = vmatprep.subr.bf16.mxu0 %v920
        %950 = vmatpush1.bf16.msra.mxu0 %v919
        %951 = vmatprep.subr.bf16.mxu0 0
        %952 = vmatpush1.bf16.msra.mxu0 0
        %953 = vmatprep.subr.bf16.mxu0 0
        %954 = vmatpush1.bf16.msra.mxu0 0
        %955 = vmatprep.subr.bf16.mxu0 0
        %956 = vmatpush1.bf16.msra.mxu0 0
        %957 = vmatprep.subr.bf16.mxu0 0
        %958 = vmatpush1.bf16.msra.mxu0 0
        %959 = vmatprep.subr.bf16.mxu0 0
        %960 = vmatpush1.bf16.msra.mxu0 0
        %961 = vmatprep.subr.bf16.mxu0 0
        %962 = vmatpush1.bf16.msra.mxu0 0
        %963 = vmatprep.subr.bf16.mxu0 0
        %964 = vmatpush1.bf16.msra.mxu0 0
        %965 = vmatprep.subr.bf16.mxu0 0
        %966 = vmatpush1.bf16.msra.mxu0 0
        %967 = vmatprep.subr.bf16.mxu0 0
        %968 = vmatpush1.bf16.msra.mxu0 0
        %969 = vmatprep.subr.bf16.mxu0 0
        %970 = vmatpush1.bf16.msra.mxu0 0
        %971 = vmatprep.subr.bf16.mxu0 0
        %972 = vmatpush1.bf16.msra.mxu0 0
        %973 = vmatprep.subr.bf16.mxu0 0
        %974 = vmatpush1.bf16.msra.mxu0 0
        %975 = vmatprep.subr.bf16.mxu0 0
        %976 = vmatpush1.bf16.msra.mxu0 0
        %977 = vmatprep.subr.bf16.mxu0 0
        %978 = vmatpush1.bf16.msra.mxu0 0
        %979 = vmatprep.subr.bf16.mxu0 0
        %980 = vmatpush1.bf16.msra.mxu0 0
        %981 = vmatprep.mubr.bf16.mxu0 0
        %982 = vmatmul.mubr.bf16.gmra.mrb[0].mxu0 %v926
        %v983 = vpop.f32.mrb[0].mxu0
        %v984 = vadd.f32 %v897, %v983
        %v985 = vpop.f32.mrb[0].mxu0
        %v986 = vadd.f32 %v901, %v985
        %v987 = vpop.f32.mrb[0].mxu0
        %v988 = vadd.f32 %v897, %v987
        %v989 = vpop.f32.mrb[0].mxu0
        %v990 = vadd.f32 %v901, %v989
        %991 = vmatprep.mubr.bf16.mxu0 0
        %992 = vmatmul.mubr.bf16.gmra.mrb[0].mxu0 %v929
        %v993 = vpop.f32.mrb[0].mxu0
        %v994 = vadd.f32 %v897, %v993
        %v995 = vpop.f32.mrb[0].mxu0
        %v996 = vadd.f32 %v901, %v995
        %v997 = vpop.f32.mrb[0].mxu0
        %v998 = vadd.f32 %v897, %v997
        %v999 = vpop.f32.mrb[0].mxu0
        %v1000 = vadd.f32 %v901, %v999
        %1001 = vmatprep.mubr.bf16.mxu0 0
        %1002 = vmatmul.mubr.bf16.gmra.mrb[0].mxu0 %v932
        %v1003 = vpop.f32.mrb[0].mxu0
        %v1004 = vadd.f32 %v897, %v1003
        %v1005 = vpop.f32.mrb[0].mxu0
        %v1006 = vadd.f32 %v901, %v1005
        %v1007 = vpop.f32.mrb[0].mxu0
        %v1008 = vadd.f32 %v897, %v1007
        %v1009 = vpop.f32.mrb[0].mxu0
        %v1010 = vadd.f32 %v901, %v1009
        %1011 = vmatprep.mubr.bf16.mxu0 0
        %1012 = vmatmul.mubr.bf16.gmra.mrb[0].mxu0 %v935
        %v1013 = vpop.f32.mrb[0].mxu0
        %v1014 = vadd.f32 %v897, %v1013
        %v1015 = vpop.f32.mrb[0].mxu0
        %v1016 = vadd.f32 %v901, %v1015
        %v1017 = vpop.f32.mrb[0].mxu0
        %v1018 = vadd.f32 %v897, %v1017
        %v1019 = vpop.f32.mrb[0].mxu0
        %v1020 = vadd.f32 %v901, %v1019
        %1021 = vmatprep.mubr.bf16.mxu0 0
        %1022 = vmatmul.mubr.bf16.gmra.mrb[0].mxu0 %v938
        %v1023 = vpop.f32.mrb[0].mxu0
        %v1024 = vadd.f32 %v897, %v1023
        %v1025 = vpop.f32.mrb[0].mxu0
        %v1026 = vadd.f32 %v901, %v1025
        %v1027 = vpop.f32.mrb[0].mxu0
        %v1028 = vadd.f32 %v897, %v1027
        %v1029 = vpop.f32.mrb[0].mxu0
        %v1030 = vadd.f32 %v901, %v1029
        %1031 = vmatprep.mubr.bf16.mxu0 0
        %1032 = vmatmul.mubr.bf16.gmra.mrb[0].mxu0 %v941
        %v1033 = vpop.f32.mrb[0].mxu0
        %v1034 = vadd.f32 %v897, %v1033
        %v1035 = vpop.f32.mrb[0].mxu0
        %v1036 = vadd.f32 %v901, %v1035
        %v1037 = vpop.f32.mrb[0].mxu0
        %v1038 = vadd.f32 %v897, %v1037
        %v1039 = vpop.f32.mrb[0].mxu0
        %v1040 = vadd.f32 %v901, %v1039
        %1041 = vmatprep.mubr.bf16.mxu0 0
        %1042 = vmatmul.mubr.bf16.gmra.mrb[0].mxu0 %v944
        %v1043 = vpop.f32.mrb[0].mxu0
        %v1044 = vadd.f32 %v897, %v1043
        %v1045 = vpop.f32.mrb[0].mxu0
        %v1046 = vadd.f32 %v901, %v1045
        %v1047 = vpop.f32.mrb[0].mxu0
        %v1048 = vadd.f32 %v897, %v1047
        %v1049 = vpop.f32.mrb[0].mxu0
        %v1050 = vadd.f32 %v901, %v1049
        %1051 = vmatprep.mubr.bf16.mxu0 0
        %1052 = vmatmul.mubr.bf16.gmra.mrb[0].mxu0 %v947
        %v1053 = vpop.f32.mrb[0].mxu0
        %v1054 = vadd.f32 %v897, %v1053
        %v1055 = vpop.f32.mrb[0].mxu0
        %v1056 = vadd.f32 %v901, %v1055
        %v1057 = vpop.f32.mrb[0].mxu0
        %v1058 = vadd.f32 %v897, %v1057
        %v1059 = vpop.f32.mrb[0].mxu0
        %v1060 = vadd.f32 %v901, %v1059
        %1061 = vdwg.mxu0
        %1062 = vmatprep.subr.bf16.mxu0 0
        %1063 = vmatpush1.bf16.msra.mxu0 %v921
        %1064 = vmatprep.subr.bf16.mxu0 0
        %1065 = vmatpush1.bf16.msra.mxu0 0
        %1066 = vmatprep.subr.bf16.mxu0 0
        %1067 = vmatpush1.bf16.msra.mxu0 0
        %1068 = vmatprep.subr.bf16.mxu0 0
        %1069 = vmatpush1.bf16.msra.mxu0 0
        %1070 = vmatprep.subr.bf16.mxu0 0
        %1071 = vmatpush1.bf16.msra.mxu0 0
        %1072 = vmatprep.subr.bf16.mxu0 0
        %1073 = vmatpush1.bf16.msra.mxu0 0
        %1074 = vmatprep.subr.bf16.mxu0 0
        %1075 = vmatpush1.bf16.msra.mxu0 0
        %1076 = vmatprep.subr.bf16.mxu0 0
        %1077 = vmatpush1.bf16.msra.mxu0 0
        %1078 = vmatprep.subr.bf16.mxu0 0
        %1079 = vmatpush1.bf16.msra.mxu0 0
        %1080 = vmatprep.subr.bf16.mxu0 0
        %1081 = vmatpush1.bf16.msra.mxu0 0
        %1082 = vmatprep.subr.bf16.mxu0 0
        %1083 = vmatpush1.bf16.msra.mxu0 0
        %1084 = vmatprep.subr.bf16.mxu0 0
        %1085 = vmatpush1.bf16.msra.mxu0 0
        %1086 = vmatprep.subr.bf16.mxu0 0
        %1087 = vmatpush1.bf16.msra.mxu0 0
        %1088 = vmatprep.subr.bf16.mxu0 0
        %1089 = vmatpush1.bf16.msra.mxu0 0
        %1090 = vmatprep.subr.bf16.mxu0 0
        %1091 = vmatpush1.bf16.msra.mxu0 0
        %1092 = vmatprep.subr.bf16.mxu0 0
        %1093 = vmatpush1.bf16.msra.mxu0 0
        %1094 = vmatprep.mubr.bf16.mxu0 0
        %1095 = vmatmul.mubr.bf16.gmra.mrb[0].mxu0 %v926
        %v1096 = vpop.f32.mrb[0].mxu0
        %v1097 = vadd.f32 %v905, %v1096
        %v1098 = vpop.f32.mrb[0].mxu0
        %v1099 = vpop.f32.mrb[0].mxu0
        %v1100 = vadd.f32 %v905, %v1099
        %v1101 = vpop.f32.mrb[0].mxu0
        %1102 = vmatprep.mubr.bf16.mxu0 0
        %1103 = vmatmul.mubr.bf16.gmra.mrb[0].mxu0 %v929
        %v1104 = vpop.f32.mrb[0].mxu0
        %v1105 = vadd.f32 %v905, %v1104
        %v1106 = vpop.f32.mrb[0].mxu0
        %v1107 = vpop.f32.mrb[0].mxu0
        %v1108 = vadd.f32 %v905, %v1107
        %v1109 = vpop.f32.mrb[0].mxu0
        %1110 = vmatprep.mubr.bf16.mxu0 0
        %1111 = vmatmul.mubr.bf16.gmra.mrb[0].mxu0 %v932
        %v1112 = vpop.f32.mrb[0].mxu0
        %v1113 = vadd.f32 %v905, %v1112
        %v1114 = vpop.f32.mrb[0].mxu0
        %v1115 = vpop.f32.mrb[0].mxu0
        %v1116 = vadd.f32 %v905, %v1115
        %v1117 = vpop.f32.mrb[0].mxu0
        %1118 = vmatprep.mubr.bf16.mxu0 0
        %1119 = vmatmul.mubr.bf16.gmra.mrb[0].mxu0 %v935
        %v1120 = vpop.f32.mrb[0].mxu0
        %v1121 = vadd.f32 %v905, %v1120
        %v1122 = vpop.f32.mrb[0].mxu0
        %v1123 = vpop.f32.mrb[0].mxu0
        %v1124 = vadd.f32 %v905, %v1123
        %v1125 = vpop.f32.mrb[0].mxu0
        %1126 = vmatprep.mubr.bf16.mxu0 0
        %1127 = vmatmul.mubr.bf16.gmra.mrb[0].mxu0 %v938
        %v1128 = vpop.f32.mrb[0].mxu0
        %v1129 = vadd.f32 %v905, %v1128
        %v1130 = vpop.f32.mrb[0].mxu0
        %v1131 = vpop.f32.mrb[0].mxu0
        %v1132 = vadd.f32 %v905, %v1131
        %v1133 = vpop.f32.mrb[0].mxu0
        %1134 = vmatprep.mubr.bf16.mxu0 0
        %1135 = vmatmul.mubr.bf16.gmra.mrb[0].mxu0 %v941
        %v1136 = vpop.f32.mrb[0].mxu0
        %v1137 = vadd.f32 %v905, %v1136
        %v1138 = vpop.f32.mrb[0].mxu0
        %v1139 = vpop.f32.mrb[0].mxu0
        %v1140 = vadd.f32 %v905, %v1139
        %v1141 = vpop.f32.mrb[0].mxu0
        %1142 = vmatprep.mubr.bf16.mxu0 0
        %1143 = vmatmul.mubr.bf16.gmra.mrb[0].mxu0 %v944
        %v1144 = vpop.f32.mrb[0].mxu0
        %v1145 = vadd.f32 %v905, %v1144
        %v1146 = vpop.f32.mrb[0].mxu0
        %v1147 = vpop.f32.mrb[0].mxu0
        %v1148 = vadd.f32 %v905, %v1147
        %v1149 = vpop.f32.mrb[0].mxu0
        %1150 = vmatprep.mubr.bf16.mxu0 0
        %1151 = vmatmul.mubr.bf16.gmra.mrb[0].mxu0 %v947
        %v1152 = vpop.f32.mrb[0].mxu0
        %v1153 = vadd.f32 %v905, %v1152
        %v1154 = vpop.f32.mrb[0].mxu0
        %v1155 = vpop.f32.mrb[0].mxu0
        %v1156 = vadd.f32 %v905, %v1155
        %v1157 = vpop.f32.mrb[0].mxu0
        %1158 = vdwg.mxu0
        %v1159 = vxor.u32 %v984, 2147483648
        %v1160 = vxor.u32 %v988, 2147483648
        %v1161 = vxor.u32 %v994, 2147483648
        %v1162 = vxor.u32 %v998, 2147483648
        %v1163 = vxor.u32 %v1004, 2147483648
        %v1164 = vxor.u32 %v1008, 2147483648
        %v1165 = vxor.u32 %v1014, 2147483648
        %v1166 = vxor.u32 %v1018, 2147483648
        %v1167 = vxor.u32 %v1024, 2147483648
        %v1168 = vxor.u32 %v1028, 2147483648
        %v1169 = vxor.u32 %v1034, 2147483648
        %v1170 = vxor.u32 %v1038, 2147483648
        %v1171 = vxor.u32 %v1044, 2147483648
        %v1172 = vxor.u32 %v1048, 2147483648
        %v1173 = vxor.u32 %v1054, 2147483648
        %v1174 = vxor.u32 %v1058, 2147483648
        %v1175 = vmul.f32 %v1159, 1.442695
        %v1176 = vpow.pop %v1175
        %v1177 = vmul.f32 %v1160, 1.442695
        %v1178 = vpow.pop %v1177
        %v1179 = vmul.f32 %v1161, 1.442695
        %v1180 = vpow.pop %v1179
        %v1181 = vmul.f32 %v1162, 1.442695
        %v1182 = vpow.pop %v1181
        %v1183 = vmul.f32 %v1163, 1.442695
        %v1184 = vpow.pop %v1183
        %v1185 = vmul.f32 %v1164, 1.442695
        %v1186 = vpow.pop %v1185
        %v1187 = vmul.f32 %v1165, 1.442695
        %v1188 = vpow.pop %v1187
        %v1189 = vmul.f32 %v1166, 1.442695
        %v1190 = vpow.pop %v1189
        %v1191 = vmul.f32 %v1167, 1.442695
        %v1192 = vpow.pop %v1191
        %v1193 = vmul.f32 %v1168, 1.442695
        %v1194 = vpow.pop %v1193
        %v1195 = vmul.f32 %v1169, 1.442695
        %v1196 = vpow.pop %v1195
        %v1197 = vmul.f32 %v1170, 1.442695
        %v1198 = vpow.pop %v1197
        %v1199 = vmul.f32 %v1171, 1.442695
        %v1200 = vpow.pop %v1199
        %v1201 = vmul.f32 %v1172, 1.442695
        %v1202 = vpow.pop %v1201
        %v1203 = vmul.f32 %v1173, 1.442695
        %v1204 = vpow.pop %v1203
        %v1205 = vmul.f32 %v1174, 1.442695
        %v1206 = vpow.pop %v1205
        %v1207 = vadd.f32 %v1176, 1.0
        %v1208 = vadd.f32 %v1178, 1.0
        %v1209 = vadd.f32 %v1180, 1.0
        %v1210 = vadd.f32 %v1182, 1.0
        %v1211 = vadd.f32 %v1184, 1.0
        %v1212 = vadd.f32 %v1186, 1.0
        %v1213 = vadd.f32 %v1188, 1.0
        %v1214 = vadd.f32 %v1190, 1.0
        %v1215 = vadd.f32 %v1192, 1.0
        %v1216 = vadd.f32 %v1194, 1.0
        %v1217 = vadd.f32 %v1196, 1.0
        %v1218 = vadd.f32 %v1198, 1.0
        %v1219 = vadd.f32 %v1200, 1.0
        %v1220 = vadd.f32 %v1202, 1.0
        %v1221 = vadd.f32 %v1204, 1.0
        %v1222 = vadd.f32 %v1206, 1.0
        %v1223 = vrcp.pop %v1207
        %v1224 = vmul.f32 1.0, %v1223
        %v1225 = vrcp.pop %v1208
        %v1226 = vmul.f32 1.0, %v1225
        %v1227 = vrcp.pop %v1209
        %v1228 = vmul.f32 1.0, %v1227
        %v1229 = vrcp.pop %v1210
        %v1230 = vmul.f32 1.0, %v1229
        %v1231 = vrcp.pop %v1211
        %v1232 = vmul.f32 1.0, %v1231
        %v1233 = vrcp.pop %v1212
        %v1234 = vmul.f32 1.0, %v1233
        %v1235 = vrcp.pop %v1213
        %v1236 = vmul.f32 1.0, %v1235
        %v1237 = vrcp.pop %v1214
        %v1238 = vmul.f32 1.0, %v1237
        %v1239 = vrcp.pop %v1215
        %v1240 = vmul.f32 1.0, %v1239
        %v1241 = vrcp.pop %v1216
        %v1242 = vmul.f32 1.0, %v1241
        %v1243 = vrcp.pop %v1217
        %v1244 = vmul.f32 1.0, %v1243
        %v1245 = vrcp.pop %v1218
        %v1246 = vmul.f32 1.0, %v1245
        %v1247 = vrcp.pop %v1219
        %v1248 = vmul.f32 1.0, %v1247
        %v1249 = vrcp.pop %v1220
        %v1250 = vmul.f32 1.0, %v1249
        %v1251 = vrcp.pop %v1221
        %v1252 = vmul.f32 1.0, %v1251
        %v1253 = vrcp.pop %v1222
        %v1254 = vmul.f32 1.0, %v1253
        %v1255 = vtanh.pop %v986
        %v1256 = vtanh.pop %v990
        %v1257 = vtanh.pop %v996
        %v1258 = vtanh.pop %v1000
        %v1259 = vtanh.pop %v1006
        %v1260 = vtanh.pop %v1010
        %v1261 = vtanh.pop %v1016
        %v1262 = vtanh.pop %v1020
        %v1263 = vtanh.pop %v1026
        %v1264 = vtanh.pop %v1030
        %v1265 = vtanh.pop %v1036
        %v1266 = vtanh.pop %v1040
        %v1267 = vtanh.pop %v1046
        %v1268 = vtanh.pop %v1050
        %v1269 = vtanh.pop %v1056
        %v1270 = vtanh.pop %v1060
        %v1271 = vmul.f32 %v1224, %v1255
        %v1272 = vmul.f32 %v1226, %v1256
        %v1273 = vmul.f32 %v1228, %v1257
        %v1274 = vmul.f32 %v1230, %v1258
        %v1275 = vmul.f32 %v1232, %v1259
        %v1276 = vmul.f32 %v1234, %v1260
        %v1277 = vmul.f32 %v1236, %v1261
        %v1278 = vmul.f32 %v1238, %v1262
        %v1279 = vmul.f32 %v1240, %v1263
        %v1280 = vmul.f32 %v1242, %v1264
        %v1281 = vmul.f32 %v1244, %v1265
        %v1282 = vmul.f32 %v1246, %v1266
        %v1283 = vmul.f32 %v1248, %v1267
        %v1284 = vmul.f32 %v1250, %v1268
        %v1285 = vmul.f32 %v1252, %v1269
        %v1286 = vmul.f32 %v1254, %v1270
        %v1287 = vld [vmem:[%s3 + $0x9] sm:$0x1]
        %v1289 = vlaneseq
        %v1290 = vshrl.u32 %v1289, 7
        %v1291 = vsub.s32 0, %v1290
        %v1292 = vrot.slane %v1287, %v1291
        %v1294 = vmul.f32 %v1292, %v1271
        %v1295 = vmul.f32 %v1292, %v1272
        %v1296 = vmul.f32 %v1292, %v1273
        %v1297 = vmul.f32 %v1292, %v1274
        %v1298 = vmul.f32 %v1292, %v1275
        %v1299 = vmul.f32 %v1292, %v1276
        %v1300 = vmul.f32 %v1292, %v1277
        %v1301 = vmul.f32 %v1292, %v1278
        %v1302 = vmul.f32 %v1292, %v1279
        %v1303 = vmul.f32 %v1292, %v1280
        %v1304 = vmul.f32 %v1292, %v1281
        %v1305 = vmul.f32 %v1292, %v1282
        %v1306 = vmul.f32 %v1292, %v1283
        %v1307 = vmul.f32 %v1292, %v1284
        %v1308 = vmul.f32 %v1292, %v1285
        %v1309 = vmul.f32 %v1292, %v1286
        %v1310 = vadd.f32 %v1097, %v1294
        %v1311 = vadd.f32 %v1100, %v1295
        %v1312 = vadd.f32 %v1105, %v1296
        %v1313 = vadd.f32 %v1108, %v1297
        %v1314 = vadd.f32 %v1113, %v1298
        %v1315 = vadd.f32 %v1116, %v1299
        %v1316 = vadd.f32 %v1121, %v1300
        %v1317 = vadd.f32 %v1124, %v1301
        %v1318 = vadd.f32 %v1129, %v1302
        %v1319 = vadd.f32 %v1132, %v1303
        %v1320 = vadd.f32 %v1137, %v1304
        %v1321 = vadd.f32 %v1140, %v1305
        %v1322 = vadd.f32 %v1145, %v1306
        %v1323 = vadd.f32 %v1148, %v1307
        %v1324 = vadd.f32 %v1153, %v1308
        %v1325 = vadd.f32 %v1156, %v1309
        %v1326 = vxor.u32 %v1310, 2147483648
        %v1327 = vxor.u32 %v1311, 2147483648
        %v1328 = vxor.u32 %v1312, 2147483648
        %v1329 = vxor.u32 %v1313, 2147483648
        %v1330 = vxor.u32 %v1314, 2147483648
        %v1331 = vxor.u32 %v1315, 2147483648
        %v1332 = vxor.u32 %v1316, 2147483648
        %v1333 = vxor.u32 %v1317, 2147483648
        %v1334 = vxor.u32 %v1318, 2147483648
        %v1335 = vxor.u32 %v1319, 2147483648
        %v1336 = vxor.u32 %v1320, 2147483648
        %v1337 = vxor.u32 %v1321, 2147483648
        %v1338 = vxor.u32 %v1322, 2147483648
        %v1339 = vxor.u32 %v1323, 2147483648
        %v1340 = vxor.u32 %v1324, 2147483648
        %v1341 = vxor.u32 %v1325, 2147483648
        %v1342 = vmul.f32 %v1326, 1.442695
        %v1343 = vpow.pop %v1342
        %v1344 = vmul.f32 %v1327, 1.442695
        %v1345 = vpow.pop %v1344
        %v1346 = vmul.f32 %v1328, 1.442695
        %v1347 = vpow.pop %v1346
        %v1348 = vmul.f32 %v1329, 1.442695
        %v1349 = vpow.pop %v1348
        %v1350 = vmul.f32 %v1330, 1.442695
        %v1351 = vpow.pop %v1350
        %v1352 = vmul.f32 %v1331, 1.442695
        %v1353 = vpow.pop %v1352
        %v1354 = vmul.f32 %v1332, 1.442695
        %v1355 = vpow.pop %v1354
        %v1356 = vmul.f32 %v1333, 1.442695
        %v1357 = vpow.pop %v1356
        %v1358 = vmul.f32 %v1334, 1.442695
        %v1359 = vpow.pop %v1358
        %v1360 = vmul.f32 %v1335, 1.442695
        %v1361 = vpow.pop %v1360
        %v1362 = vmul.f32 %v1336, 1.442695
        %v1363 = vpow.pop %v1362
        %v1364 = vmul.f32 %v1337, 1.442695
        %v1365 = vpow.pop %v1364
        %v1366 = vmul.f32 %v1338, 1.442695
        %v1367 = vpow.pop %v1366
        %v1368 = vmul.f32 %v1339, 1.442695
        %v1369 = vpow.pop %v1368
        %v1370 = vmul.f32 %v1340, 1.442695
        %v1371 = vpow.pop %v1370
        %v1372 = vmul.f32 %v1341, 1.442695
        %v1373 = vpow.pop %v1372
        %v1374 = vadd.f32 %v1343, 1.0
        %v1375 = vadd.f32 %v1345, 1.0
        %v1376 = vadd.f32 %v1347, 1.0
        %v1377 = vadd.f32 %v1349, 1.0
        %v1378 = vadd.f32 %v1351, 1.0
        %v1379 = vadd.f32 %v1353, 1.0
        %v1380 = vadd.f32 %v1355, 1.0
        %v1381 = vadd.f32 %v1357, 1.0
        %v1382 = vadd.f32 %v1359, 1.0
        %v1383 = vadd.f32 %v1361, 1.0
        %v1384 = vadd.f32 %v1363, 1.0
        %v1385 = vadd.f32 %v1365, 1.0
        %v1386 = vadd.f32 %v1367, 1.0
        %v1387 = vadd.f32 %v1369, 1.0
        %v1388 = vadd.f32 %v1371, 1.0
        %v1389 = vadd.f32 %v1373, 1.0
        %v1390 = vrcp.pop %v1374
        %v1391 = vmul.f32 1.0, %v1390
        %v1392 = vrcp.pop %v1375
        %v1393 = vmul.f32 1.0, %v1392
        %v1394 = vrcp.pop %v1376
        %v1395 = vmul.f32 1.0, %v1394
        %v1396 = vrcp.pop %v1377
        %v1397 = vmul.f32 1.0, %v1396
        %v1398 = vrcp.pop %v1378
        %v1399 = vmul.f32 1.0, %v1398
        %v1400 = vrcp.pop %v1379
        %v1401 = vmul.f32 1.0, %v1400
        %v1402 = vrcp.pop %v1380
        %v1403 = vmul.f32 1.0, %v1402
        %v1404 = vrcp.pop %v1381
        %v1405 = vmul.f32 1.0, %v1404
        %v1406 = vrcp.pop %v1382
        %v1407 = vmul.f32 1.0, %v1406
        %v1408 = vrcp.pop %v1383
        %v1409 = vmul.f32 1.0, %v1408
        %v1410 = vrcp.pop %v1384
        %v1411 = vmul.f32 1.0, %v1410
        %v1412 = vrcp.pop %v1385
        %v1413 = vmul.f32 1.0, %v1412
        %v1414 = vrcp.pop %v1386
        %v1415 = vmul.f32 1.0, %v1414
        %v1416 = vrcp.pop %v1387
        %v1417 = vmul.f32 1.0, %v1416
        %v1418 = vrcp.pop %v1388
        %v1419 = vmul.f32 1.0, %v1418
        %v1420 = vrcp.pop %v1389
        %v1421 = vmul.f32 1.0, %v1420
        %v1422 = vtanh.pop %v1271
        %v1423 = vtanh.pop %v1272
        %v1424 = vtanh.pop %v1273
        %v1425 = vtanh.pop %v1274
        %v1426 = vtanh.pop %v1275
        %v1427 = vtanh.pop %v1276
        %v1428 = vtanh.pop %v1277
        %v1429 = vtanh.pop %v1278
        %v1430 = vtanh.pop %v1279
        %v1431 = vtanh.pop %v1280
        %v1432 = vtanh.pop %v1281
        %v1433 = vtanh.pop %v1282
        %v1434 = vtanh.pop %v1283
        %v1435 = vtanh.pop %v1284
        %v1436 = vtanh.pop %v1285
        %v1437 = vtanh.pop %v1286
        %v1438 = vmul.f32 %v1391, %v1422
        %v1439 = vmul.f32 %v1393, %v1423
        %v1440 = vmul.f32 %v1395, %v1424
        %v1441 = vmul.f32 %v1397, %v1425
        %v1442 = vmul.f32 %v1399, %v1426
        %v1443 = vmul.f32 %v1401, %v1427
        %v1444 = vmul.f32 %v1403, %v1428
        %v1445 = vmul.f32 %v1405, %v1429
        %v1446 = vmul.f32 %v1407, %v1430
        %v1447 = vmul.f32 %v1409, %v1431
        %v1448 = vmul.f32 %v1411, %v1432
        %v1449 = vmul.f32 %v1413, %v1433
        %v1450 = vmul.f32 %v1415, %v1434
        %v1451 = vmul.f32 %v1417, %v1435
        %v1452 = vmul.f32 %v1419, %v1436
        %v1453 = vmul.f32 %v1421, %v1437
        %v1454 = vpack.c.bf16 %v1439, %v1438
        %v1455 = vpack.c.bf16 %v1441, %v1440
        %v1456 = vpack.c.bf16 %v1443, %v1442
        %v1457 = vpack.c.bf16 %v1445, %v1444
        %v1458 = vpack.c.bf16 %v1447, %v1446
        %v1459 = vpack.c.bf16 %v1449, %v1448
        %v1460 = vpack.c.bf16 %v1451, %v1450
        %v1461 = vpack.c.bf16 %v1453, %v1452
        %v1462 = vld [vmem:[#allocation2 + $0x14] sm:$0xff]
        %v1463 = vld [vmem:[#allocation2 + $0x1c] sm:$0xf]
        %v1464 = vld [vmem:[#allocation2 + $0x38] sm:$0xff]
        %v1465 = vld [vmem:[#allocation2 + $0x40] sm:$0xf]
        %v1466 = vld [vmem:[%s3 + $0x5] sm:$0x7]
        %v1468 = vlaneseq
        %v1469 = vshrl.u32 %v1468, 7
        %v1470 = vsub.s32 0, %v1469
        %v1471 = vrot.slane %v1466, %v1470
        %v1472 = vlaneseq
        %v1473 = vshrl.u32 %v1472, 7
        %v1474 = vsub.s32 1, %v1473
        %v1475 = vrot.slane %v1466, %v1474
        %v1476 = vlaneseq
        %v1477 = vshrl.u32 %v1476, 7
        %v1478 = vsub.s32 2, %v1477
        %v1479 = vrot.slane %v1466, %v1478
        %v1487 = vunpack.c.l.b16 %v1462
        %v1488 = vunpack.c.h.b16 %v1462
        %v1489 = vunpack.c.l.b16 %v1463
        %v1490 = vunpack.c.l.b16 %v1464
        %v1491 = vunpack.c.h.b16 %v1464
        %v1492 = vunpack.c.l.b16 %v1465
        %v1493 = vpack.c.b16 %v1490, %v1487
        %v1494 = vpack.c.b16 %v1491, %v1488
        %v1495 = vpack.c.b16 %v1492, %v1489
        %v1500 = vsel %vm317, %v1454, 0
        %v1503 = vsel %vm317, %v1455, 0
        %v1506 = vsel %vm317, %v1456, 0
        %v1509 = vsel %vm317, %v1457, 0
        %v1512 = vsel %vm317, %v1458, 0
        %v1515 = vsel %vm317, %v1459, 0
        %v1518 = vsel %vm317, %v1460, 0
        %v1521 = vsel %vm317, %v1461, 0
        %1523 = vmatprep.subr.bf16.mxu0 %v1494
        %1524 = vmatpush1.bf16.msra.mxu0 %v1493
        %1525 = vmatprep.subr.bf16.mxu0 0
        %1526 = vmatpush1.bf16.msra.mxu0 0
        %1527 = vmatprep.subr.bf16.mxu0 0
        %1528 = vmatpush1.bf16.msra.mxu0 0
        %1529 = vmatprep.subr.bf16.mxu0 0
        %1530 = vmatpush1.bf16.msra.mxu0 0
        %1531 = vmatprep.subr.bf16.mxu0 0
        %1532 = vmatpush1.bf16.msra.mxu0 0
        %1533 = vmatprep.subr.bf16.mxu0 0
        %1534 = vmatpush1.bf16.msra.mxu0 0
        %1535 = vmatprep.subr.bf16.mxu0 0
        %1536 = vmatpush1.bf16.msra.mxu0 0
        %1537 = vmatprep.subr.bf16.mxu0 0
        %1538 = vmatpush1.bf16.msra.mxu0 0
        %1539 = vmatprep.subr.bf16.mxu0 0
        %1540 = vmatpush1.bf16.msra.mxu0 0
        %1541 = vmatprep.subr.bf16.mxu0 0
        %1542 = vmatpush1.bf16.msra.mxu0 0
        %1543 = vmatprep.subr.bf16.mxu0 0
        %1544 = vmatpush1.bf16.msra.mxu0 0
        %1545 = vmatprep.subr.bf16.mxu0 0
        %1546 = vmatpush1.bf16.msra.mxu0 0
        %1547 = vmatprep.subr.bf16.mxu0 0
        %1548 = vmatpush1.bf16.msra.mxu0 0
        %1549 = vmatprep.subr.bf16.mxu0 0
        %1550 = vmatpush1.bf16.msra.mxu0 0
        %1551 = vmatprep.subr.bf16.mxu0 0
        %1552 = vmatpush1.bf16.msra.mxu0 0
        %1553 = vmatprep.subr.bf16.mxu0 0
        %1554 = vmatpush1.bf16.msra.mxu0 0
        %1555 = vmatprep.mubr.bf16.mxu0 0
        %1556 = vmatmul.mubr.bf16.gmra.mrb[0].mxu0 %v1500
        %v1557 = vpop.f32.mrb[0].mxu0
        %v1558 = vadd.f32 %v1471, %v1557
        %v1559 = vpop.f32.mrb[0].mxu0
        %v1560 = vadd.f32 %v1475, %v1559
        %v1561 = vpop.f32.mrb[0].mxu0
        %v1562 = vadd.f32 %v1471, %v1561
        %v1563 = vpop.f32.mrb[0].mxu0
        %v1564 = vadd.f32 %v1475, %v1563
        %1565 = vmatprep.mubr.bf16.mxu0 0
        %1566 = vmatmul.mubr.bf16.gmra.mrb[0].mxu0 %v1503
        %v1567 = vpop.f32.mrb[0].mxu0
        %v1568 = vadd.f32 %v1471, %v1567
        %v1569 = vpop.f32.mrb[0].mxu0
        %v1570 = vadd.f32 %v1475, %v1569
        %v1571 = vpop.f32.mrb[0].mxu0
        %v1572 = vadd.f32 %v1471, %v1571
        %v1573 = vpop.f32.mrb[0].mxu0
        %v1574 = vadd.f32 %v1475, %v1573
        %1575 = vmatprep.mubr.bf16.mxu0 0
        %1576 = vmatmul.mubr.bf16.gmra.mrb[0].mxu0 %v1506
        %v1577 = vpop.f32.mrb[0].mxu0
        %v1578 = vadd.f32 %v1471, %v1577
        %v1579 = vpop.f32.mrb[0].mxu0
        %v1580 = vadd.f32 %v1475, %v1579
        %v1581 = vpop.f32.mrb[0].mxu0
        %v1582 = vadd.f32 %v1471, %v1581
        %v1583 = vpop.f32.mrb[0].mxu0
        %v1584 = vadd.f32 %v1475, %v1583
        %1585 = vmatprep.mubr.bf16.mxu0 0
        %1586 = vmatmul.mubr.bf16.gmra.mrb[0].mxu0 %v1509
        %v1587 = vpop.f32.mrb[0].mxu0
        %v1588 = vadd.f32 %v1471, %v1587
        %v1589 = vpop.f32.mrb[0].mxu0
        %v1590 = vadd.f32 %v1475, %v1589
        %v1591 = vpop.f32.mrb[0].mxu0
        %v1592 = vadd.f32 %v1471, %v1591
        %v1593 = vpop.f32.mrb[0].mxu0
        %v1594 = vadd.f32 %v1475, %v1593
        %1595 = vmatprep.mubr.bf16.mxu0 0
        %1596 = vmatmul.mubr.bf16.gmra.mrb[0].mxu0 %v1512
        %v1597 = vpop.f32.mrb[0].mxu0
        %v1598 = vadd.f32 %v1471, %v1597
        %v1599 = vpop.f32.mrb[0].mxu0
        %v1600 = vadd.f32 %v1475, %v1599
        %v1601 = vpop.f32.mrb[0].mxu0
        %v1602 = vadd.f32 %v1471, %v1601
        %v1603 = vpop.f32.mrb[0].mxu0
        %v1604 = vadd.f32 %v1475, %v1603
        %1605 = vmatprep.mubr.bf16.mxu0 0
        %1606 = vmatmul.mubr.bf16.gmra.mrb[0].mxu0 %v1515
        %v1607 = vpop.f32.mrb[0].mxu0
        %v1608 = vadd.f32 %v1471, %v1607
        %v1609 = vpop.f32.mrb[0].mxu0
        %v1610 = vadd.f32 %v1475, %v1609
        %v1611 = vpop.f32.mrb[0].mxu0
        %v1612 = vadd.f32 %v1471, %v1611
        %v1613 = vpop.f32.mrb[0].mxu0
        %v1614 = vadd.f32 %v1475, %v1613
        %1615 = vmatprep.mubr.bf16.mxu0 0
        %1616 = vmatmul.mubr.bf16.gmra.mrb[0].mxu0 %v1518
        %v1617 = vpop.f32.mrb[0].mxu0
        %v1618 = vadd.f32 %v1471, %v1617
        %v1619 = vpop.f32.mrb[0].mxu0
        %v1620 = vadd.f32 %v1475, %v1619
        %v1621 = vpop.f32.mrb[0].mxu0
        %v1622 = vadd.f32 %v1471, %v1621
        %v1623 = vpop.f32.mrb[0].mxu0
        %v1624 = vadd.f32 %v1475, %v1623
        %1625 = vmatprep.mubr.bf16.mxu0 0
        %1626 = vmatmul.mubr.bf16.gmra.mrb[0].mxu0 %v1521
        %v1627 = vpop.f32.mrb[0].mxu0
        %v1628 = vadd.f32 %v1471, %v1627
        %v1629 = vpop.f32.mrb[0].mxu0
        %v1630 = vadd.f32 %v1475, %v1629
        %v1631 = vpop.f32.mrb[0].mxu0
        %v1632 = vadd.f32 %v1471, %v1631
        %v1633 = vpop.f32.mrb[0].mxu0
        %v1634 = vadd.f32 %v1475, %v1633
        %1635 = vdwg.mxu0
        %1636 = vmatprep.subr.bf16.mxu0 0
        %1637 = vmatpush1.bf16.msra.mxu0 %v1495
        %1638 = vmatprep.subr.bf16.mxu0 0
        %1639 = vmatpush1.bf16.msra.mxu0 0
        %1640 = vmatprep.subr.bf16.mxu0 0
        %1641 = vmatpush1.bf16.msra.mxu0 0
        %1642 = vmatprep.subr.bf16.mxu0 0
        %1643 = vmatpush1.bf16.msra.mxu0 0
        %1644 = vmatprep.subr.bf16.mxu0 0
        %1645 = vmatpush1.bf16.msra.mxu0 0
        %1646 = vmatprep.subr.bf16.mxu0 0
        %1647 = vmatpush1.bf16.msra.mxu0 0
        %1648 = vmatprep.subr.bf16.mxu0 0
        %1649 = vmatpush1.bf16.msra.mxu0 0
        %1650 = vmatprep.subr.bf16.mxu0 0
        %1651 = vmatpush1.bf16.msra.mxu0 0
        %1652 = vmatprep.subr.bf16.mxu0 0
        %1653 = vmatpush1.bf16.msra.mxu0 0
        %1654 = vmatprep.subr.bf16.mxu0 0
        %1655 = vmatpush1.bf16.msra.mxu0 0
        %1656 = vmatprep.subr.bf16.mxu0 0
        %1657 = vmatpush1.bf16.msra.mxu0 0
        %1658 = vmatprep.subr.bf16.mxu0 0
        %1659 = vmatpush1.bf16.msra.mxu0 0
        %1660 = vmatprep.subr.bf16.mxu0 0
        %1661 = vmatpush1.bf16.msra.mxu0 0
        %1662 = vmatprep.subr.bf16.mxu0 0
        %1663 = vmatpush1.bf16.msra.mxu0 0
        %1664 = vmatprep.subr.bf16.mxu0 0
        %1665 = vmatpush1.bf16.msra.mxu0 0
        %1666 = vmatprep.subr.bf16.mxu0 0
        %1667 = vmatpush1.bf16.msra.mxu0 0
        %1668 = vmatprep.mubr.bf16.mxu0 0
        %1669 = vmatmul.mubr.bf16.gmra.mrb[0].mxu0 %v1500
        %v1670 = vpop.f32.mrb[0].mxu0
        %v1671 = vadd.f32 %v1479, %v1670
        %v1672 = vpop.f32.mrb[0].mxu0
        %v1673 = vpop.f32.mrb[0].mxu0
        %v1674 = vadd.f32 %v1479, %v1673
        %v1675 = vpop.f32.mrb[0].mxu0
        %1676 = vmatprep.mubr.bf16.mxu0 0
        %1677 = vmatmul.mubr.bf16.gmra.mrb[0].mxu0 %v1503
        %v1678 = vpop.f32.mrb[0].mxu0
        %v1679 = vadd.f32 %v1479, %v1678
        %v1680 = vpop.f32.mrb[0].mxu0
        %v1681 = vpop.f32.mrb[0].mxu0
        %v1682 = vadd.f32 %v1479, %v1681
        %v1683 = vpop.f32.mrb[0].mxu0
        %1684 = vmatprep.mubr.bf16.mxu0 0
        %1685 = vmatmul.mubr.bf16.gmra.mrb[0].mxu0 %v1506
        %v1686 = vpop.f32.mrb[0].mxu0
        %v1687 = vadd.f32 %v1479, %v1686
        %v1688 = vpop.f32.mrb[0].mxu0
        %v1689 = vpop.f32.mrb[0].mxu0
        %v1690 = vadd.f32 %v1479, %v1689
        %v1691 = vpop.f32.mrb[0].mxu0
        %1692 = vmatprep.mubr.bf16.mxu0 0
        %1693 = vmatmul.mubr.bf16.gmra.mrb[0].mxu0 %v1509
        %v1694 = vpop.f32.mrb[0].mxu0
        %v1695 = vadd.f32 %v1479, %v1694
        %v1696 = vpop.f32.mrb[0].mxu0
        %v1697 = vpop.f32.mrb[0].mxu0
        %v1698 = vadd.f32 %v1479, %v1697
        %v1699 = vpop.f32.mrb[0].mxu0
        %1700 = vmatprep.mubr.bf16.mxu0 0
        %1701 = vmatmul.mubr.bf16.gmra.mrb[0].mxu0 %v1512
        %v1702 = vpop.f32.mrb[0].mxu0
        %v1703 = vadd.f32 %v1479, %v1702
        %v1704 = vpop.f32.mrb[0].mxu0
        %v1705 = vpop.f32.mrb[0].mxu0
        %v1706 = vadd.f32 %v1479, %v1705
        %v1707 = vpop.f32.mrb[0].mxu0
        %1708 = vmatprep.mubr.bf16.mxu0 0
        %1709 = vmatmul.mubr.bf16.gmra.mrb[0].mxu0 %v1515
        %v1710 = vpop.f32.mrb[0].mxu0
        %v1711 = vadd.f32 %v1479, %v1710
        %v1712 = vpop.f32.mrb[0].mxu0
        %v1713 = vpop.f32.mrb[0].mxu0
        %v1714 = vadd.f32 %v1479, %v1713
        %v1715 = vpop.f32.mrb[0].mxu0
        %1716 = vmatprep.mubr.bf16.mxu0 0
        %1717 = vmatmul.mubr.bf16.gmra.mrb[0].mxu0 %v1518
        %v1718 = vpop.f32.mrb[0].mxu0
        %v1719 = vadd.f32 %v1479, %v1718
        %v1720 = vpop.f32.mrb[0].mxu0
        %v1721 = vpop.f32.mrb[0].mxu0
        %v1722 = vadd.f32 %v1479, %v1721
        %v1723 = vpop.f32.mrb[0].mxu0
        %1724 = vmatprep.mubr.bf16.mxu0 0
        %1725 = vmatmul.mubr.bf16.gmra.mrb[0].mxu0 %v1521
        %v1726 = vpop.f32.mrb[0].mxu0
        %v1727 = vadd.f32 %v1479, %v1726
        %v1728 = vpop.f32.mrb[0].mxu0
        %v1729 = vpop.f32.mrb[0].mxu0
        %v1730 = vadd.f32 %v1479, %v1729
        %v1731 = vpop.f32.mrb[0].mxu0
        %1732 = vdwg.mxu0
        %v1733 = vxor.u32 %v1558, 2147483648
        %v1734 = vxor.u32 %v1562, 2147483648
        %v1735 = vxor.u32 %v1568, 2147483648
        %v1736 = vxor.u32 %v1572, 2147483648
        %v1737 = vxor.u32 %v1578, 2147483648
        %v1738 = vxor.u32 %v1582, 2147483648
        %v1739 = vxor.u32 %v1588, 2147483648
        %v1740 = vxor.u32 %v1592, 2147483648
        %v1741 = vxor.u32 %v1598, 2147483648
        %v1742 = vxor.u32 %v1602, 2147483648
        %v1743 = vxor.u32 %v1608, 2147483648
        %v1744 = vxor.u32 %v1612, 2147483648
        %v1745 = vxor.u32 %v1618, 2147483648
        %v1746 = vxor.u32 %v1622, 2147483648
        %v1747 = vxor.u32 %v1628, 2147483648
        %v1748 = vxor.u32 %v1632, 2147483648
        %v1749 = vmul.f32 %v1733, 1.442695
        %v1750 = vpow.pop %v1749
        %v1751 = vmul.f32 %v1734, 1.442695
        %v1752 = vpow.pop %v1751
        %v1753 = vmul.f32 %v1735, 1.442695
        %v1754 = vpow.pop %v1753
        %v1755 = vmul.f32 %v1736, 1.442695
        %v1756 = vpow.pop %v1755
        %v1757 = vmul.f32 %v1737, 1.442695
        %v1758 = vpow.pop %v1757
        %v1759 = vmul.f32 %v1738, 1.442695
        %v1760 = vpow.pop %v1759
        %v1761 = vmul.f32 %v1739, 1.442695
        %v1762 = vpow.pop %v1761
        %v1763 = vmul.f32 %v1740, 1.442695
        %v1764 = vpow.pop %v1763
        %v1765 = vmul.f32 %v1741, 1.442695
        %v1766 = vpow.pop %v1765
        %v1767 = vmul.f32 %v1742, 1.442695
        %v1768 = vpow.pop %v1767
        %v1769 = vmul.f32 %v1743, 1.442695
        %v1770 = vpow.pop %v1769
        %v1771 = vmul.f32 %v1744, 1.442695
        %v1772 = vpow.pop %v1771
        %v1773 = vmul.f32 %v1745, 1.442695
        %v1774 = vpow.pop %v1773
        %v1775 = vmul.f32 %v1746, 1.442695
        %v1776 = vpow.pop %v1775
        %v1777 = vmul.f32 %v1747, 1.442695
        %v1778 = vpow.pop %v1777
        %v1779 = vmul.f32 %v1748, 1.442695
        %v1780 = vpow.pop %v1779
        %v1781 = vadd.f32 %v1750, 1.0
        %v1782 = vadd.f32 %v1752, 1.0
        %v1783 = vadd.f32 %v1754, 1.0
        %v1784 = vadd.f32 %v1756, 1.0
        %v1785 = vadd.f32 %v1758, 1.0
        %v1786 = vadd.f32 %v1760, 1.0
        %v1787 = vadd.f32 %v1762, 1.0
        %v1788 = vadd.f32 %v1764, 1.0
        %v1789 = vadd.f32 %v1766, 1.0
        %v1790 = vadd.f32 %v1768, 1.0
        %v1791 = vadd.f32 %v1770, 1.0
        %v1792 = vadd.f32 %v1772, 1.0
        %v1793 = vadd.f32 %v1774, 1.0
        %v1794 = vadd.f32 %v1776, 1.0
        %v1795 = vadd.f32 %v1778, 1.0
        %v1796 = vadd.f32 %v1780, 1.0
        %v1797 = vrcp.pop %v1781
        %v1798 = vmul.f32 1.0, %v1797
        %v1799 = vrcp.pop %v1782
        %v1800 = vmul.f32 1.0, %v1799
        %v1801 = vrcp.pop %v1783
        %v1802 = vmul.f32 1.0, %v1801
        %v1803 = vrcp.pop %v1784
        %v1804 = vmul.f32 1.0, %v1803
        %v1805 = vrcp.pop %v1785
        %v1806 = vmul.f32 1.0, %v1805
        %v1807 = vrcp.pop %v1786
        %v1808 = vmul.f32 1.0, %v1807
        %v1809 = vrcp.pop %v1787
        %v1810 = vmul.f32 1.0, %v1809
        %v1811 = vrcp.pop %v1788
        %v1812 = vmul.f32 1.0, %v1811
        %v1813 = vrcp.pop %v1789
        %v1814 = vmul.f32 1.0, %v1813
        %v1815 = vrcp.pop %v1790
        %v1816 = vmul.f32 1.0, %v1815
        %v1817 = vrcp.pop %v1791
        %v1818 = vmul.f32 1.0, %v1817
        %v1819 = vrcp.pop %v1792
        %v1820 = vmul.f32 1.0, %v1819
        %v1821 = vrcp.pop %v1793
        %v1822 = vmul.f32 1.0, %v1821
        %v1823 = vrcp.pop %v1794
        %v1824 = vmul.f32 1.0, %v1823
        %v1825 = vrcp.pop %v1795
        %v1826 = vmul.f32 1.0, %v1825
        %v1827 = vrcp.pop %v1796
        %v1828 = vmul.f32 1.0, %v1827
        %v1829 = vtanh.pop %v1560
        %v1830 = vtanh.pop %v1564
        %v1831 = vtanh.pop %v1570
        %v1832 = vtanh.pop %v1574
        %v1833 = vtanh.pop %v1580
        %v1834 = vtanh.pop %v1584
        %v1835 = vtanh.pop %v1590
        %v1836 = vtanh.pop %v1594
        %v1837 = vtanh.pop %v1600
        %v1838 = vtanh.pop %v1604
        %v1839 = vtanh.pop %v1610
        %v1840 = vtanh.pop %v1614
        %v1841 = vtanh.pop %v1620
        %v1842 = vtanh.pop %v1624
        %v1843 = vtanh.pop %v1630
        %v1844 = vtanh.pop %v1634
        %v1845 = vmul.f32 %v1798, %v1829
        %v1846 = vmul.f32 %v1800, %v1830
        %v1847 = vmul.f32 %v1802, %v1831
        %v1848 = vmul.f32 %v1804, %v1832
        %v1849 = vmul.f32 %v1806, %v1833
        %v1850 = vmul.f32 %v1808, %v1834
        %v1851 = vmul.f32 %v1810, %v1835
        %v1852 = vmul.f32 %v1812, %v1836
        %v1853 = vmul.f32 %v1814, %v1837
        %v1854 = vmul.f32 %v1816, %v1838
        %v1855 = vmul.f32 %v1818, %v1839
        %v1856 = vmul.f32 %v1820, %v1840
        %v1857 = vmul.f32 %v1822, %v1841
        %v1858 = vmul.f32 %v1824, %v1842
        %v1859 = vmul.f32 %v1826, %v1843
        %v1860 = vmul.f32 %v1828, %v1844
        %v1861 = vld [vmem:[%s3 + $0xa] sm:$0x1]
        %v1863 = vlaneseq
        %v1864 = vshrl.u32 %v1863, 7
        %v1865 = vsub.s32 0, %v1864
        %v1866 = vrot.slane %v1861, %v1865
        %v1868 = vmul.f32 %v1866, %v1845
        %v1869 = vmul.f32 %v1866, %v1846
        %v1870 = vmul.f32 %v1866, %v1847
        %v1871 = vmul.f32 %v1866, %v1848
        %v1872 = vmul.f32 %v1866, %v1849
        %v1873 = vmul.f32 %v1866, %v1850
        %v1874 = vmul.f32 %v1866, %v1851
        %v1875 = vmul.f32 %v1866, %v1852
        %v1876 = vmul.f32 %v1866, %v1853
        %v1877 = vmul.f32 %v1866, %v1854
        %v1878 = vmul.f32 %v1866, %v1855
        %v1879 = vmul.f32 %v1866, %v1856
        %v1880 = vmul.f32 %v1866, %v1857
        %v1881 = vmul.f32 %v1866, %v1858
        %v1882 = vmul.f32 %v1866, %v1859
        %v1883 = vmul.f32 %v1866, %v1860
        %v1884 = vadd.f32 %v1671, %v1868
        %v1885 = vadd.f32 %v1674, %v1869
        %v1886 = vadd.f32 %v1679, %v1870
        %v1887 = vadd.f32 %v1682, %v1871
        %v1888 = vadd.f32 %v1687, %v1872
        %v1889 = vadd.f32 %v1690, %v1873
        %v1890 = vadd.f32 %v1695, %v1874
        %v1891 = vadd.f32 %v1698, %v1875
        %v1892 = vadd.f32 %v1703, %v1876
        %v1893 = vadd.f32 %v1706, %v1877
        %v1894 = vadd.f32 %v1711, %v1878
        %v1895 = vadd.f32 %v1714, %v1879
        %v1896 = vadd.f32 %v1719, %v1880
        %v1897 = vadd.f32 %v1722, %v1881
        %v1898 = vadd.f32 %v1727, %v1882
        %v1899 = vadd.f32 %v1730, %v1883
        %v1900 = vxor.u32 %v1884, 2147483648
        %v1901 = vxor.u32 %v1885, 2147483648
        %v1902 = vxor.u32 %v1886, 2147483648
        %v1903 = vxor.u32 %v1887, 2147483648
        %v1904 = vxor.u32 %v1888, 2147483648
        %v1905 = vxor.u32 %v1889, 2147483648
        %v1906 = vxor.u32 %v1890, 2147483648
        %v1907 = vxor.u32 %v1891, 2147483648
        %v1908 = vxor.u32 %v1892, 2147483648
        %v1909 = vxor.u32 %v1893, 2147483648
        %v1910 = vxor.u32 %v1894, 2147483648
        %v1911 = vxor.u32 %v1895, 2147483648
        %v1912 = vxor.u32 %v1896, 2147483648
        %v1913 = vxor.u32 %v1897, 2147483648
        %v1914 = vxor.u32 %v1898, 2147483648
        %v1915 = vxor.u32 %v1899, 2147483648
        %v1916 = vmul.f32 %v1900, 1.442695
        %v1917 = vpow.pop %v1916
        %v1918 = vmul.f32 %v1901, 1.442695
        %v1919 = vpow.pop %v1918
        %v1920 = vmul.f32 %v1902, 1.442695
        %v1921 = vpow.pop %v1920
        %v1922 = vmul.f32 %v1903, 1.442695
        %v1923 = vpow.pop %v1922
        %v1924 = vmul.f32 %v1904, 1.442695
        %v1925 = vpow.pop %v1924
        %v1926 = vmul.f32 %v1905, 1.442695
        %v1927 = vpow.pop %v1926
        %v1928 = vmul.f32 %v1906, 1.442695
        %v1929 = vpow.pop %v1928
        %v1930 = vmul.f32 %v1907, 1.442695
        %v1931 = vpow.pop %v1930
        %v1932 = vmul.f32 %v1908, 1.442695
        %v1933 = vpow.pop %v1932
        %v1934 = vmul.f32 %v1909, 1.442695
        %v1935 = vpow.pop %v1934
        %v1936 = vmul.f32 %v1910, 1.442695
        %v1937 = vpow.pop %v1936
        %v1938 = vmul.f32 %v1911, 1.442695
        %v1939 = vpow.pop %v1938
        %v1940 = vmul.f32 %v1912, 1.442695
        %v1941 = vpow.pop %v1940
        %v1942 = vmul.f32 %v1913, 1.442695
        %v1943 = vpow.pop %v1942
        %v1944 = vmul.f32 %v1914, 1.442695
        %v1945 = vpow.pop %v1944
        %v1946 = vmul.f32 %v1915, 1.442695
        %v1947 = vpow.pop %v1946
        %v1948 = vadd.f32 %v1917, 1.0
        %v1949 = vadd.f32 %v1919, 1.0
        %v1950 = vadd.f32 %v1921, 1.0
        %v1951 = vadd.f32 %v1923, 1.0
        %v1952 = vadd.f32 %v1925, 1.0
        %v1953 = vadd.f32 %v1927, 1.0
        %v1954 = vadd.f32 %v1929, 1.0
        %v1955 = vadd.f32 %v1931, 1.0
        %v1956 = vadd.f32 %v1933, 1.0
        %v1957 = vadd.f32 %v1935, 1.0
        %v1958 = vadd.f32 %v1937, 1.0
        %v1959 = vadd.f32 %v1939, 1.0
        %v1960 = vadd.f32 %v1941, 1.0
        %v1961 = vadd.f32 %v1943, 1.0
        %v1962 = vadd.f32 %v1945, 1.0
        %v1963 = vadd.f32 %v1947, 1.0
        %v1964 = vrcp.pop %v1948
        %v1965 = vmul.f32 1.0, %v1964
        %v1966 = vrcp.pop %v1949
        %v1967 = vmul.f32 1.0, %v1966
        %v1968 = vrcp.pop %v1950
        %v1969 = vmul.f32 1.0, %v1968
        %v1970 = vrcp.pop %v1951
        %v1971 = vmul.f32 1.0, %v1970
        %v1972 = vrcp.pop %v1952
        %v1973 = vmul.f32 1.0, %v1972
        %v1974 = vrcp.pop %v1953
        %v1975 = vmul.f32 1.0, %v1974
        %v1976 = vrcp.pop %v1954
        %v1977 = vmul.f32 1.0, %v1976
        %v1978 = vrcp.pop %v1955
        %v1979 = vmul.f32 1.0, %v1978
        %v1980 = vrcp.pop %v1956
        %v1981 = vmul.f32 1.0, %v1980
        %v1982 = vrcp.pop %v1957
        %v1983 = vmul.f32 1.0, %v1982
        %v1984 = vrcp.pop %v1958
        %v1985 = vmul.f32 1.0, %v1984
        %v1986 = vrcp.pop %v1959
        %v1987 = vmul.f32 1.0, %v1986
        %v1988 = vrcp.pop %v1960
        %v1989 = vmul.f32 1.0, %v1988
        %v1990 = vrcp.pop %v1961
        %v1991 = vmul.f32 1.0, %v1990
        %v1992 = vrcp.pop %v1962
        %v1993 = vmul.f32 1.0, %v1992
        %v1994 = vrcp.pop %v1963
        %v1995 = vmul.f32 1.0, %v1994
        %v1996 = vtanh.pop %v1845
        %v1997 = vtanh.pop %v1846
        %v1998 = vtanh.pop %v1847
        %v1999 = vtanh.pop %v1848
        %v2000 = vtanh.pop %v1849
        %v2001 = vtanh.pop %v1850
        %v2002 = vtanh.pop %v1851
        %v2003 = vtanh.pop %v1852
        %v2004 = vtanh.pop %v1853
        %v2005 = vtanh.pop %v1854
        %v2006 = vtanh.pop %v1855
        %v2007 = vtanh.pop %v1856
        %v2008 = vtanh.pop %v1857
        %v2009 = vtanh.pop %v1858
        %v2010 = vtanh.pop %v1859
        %v2011 = vtanh.pop %v1860
        %v2012 = vmul.f32 %v1965, %v1996
        %v2013 = vmul.f32 %v1967, %v1997
        %v2014 = vmul.f32 %v1969, %v1998
        %v2015 = vmul.f32 %v1971, %v1999
        %v2016 = vmul.f32 %v1973, %v2000
        %v2017 = vmul.f32 %v1975, %v2001
        %v2018 = vmul.f32 %v1977, %v2002
        %v2019 = vmul.f32 %v1979, %v2003
        %v2020 = vmul.f32 %v1981, %v2004
        %v2021 = vmul.f32 %v1983, %v2005
        %v2022 = vmul.f32 %v1985, %v2006
        %v2023 = vmul.f32 %v1987, %v2007
        %v2024 = vmul.f32 %v1989, %v2008
        %v2025 = vmul.f32 %v1991, %v2009
        %v2026 = vmul.f32 %v1993, %v2010
        %v2027 = vmul.f32 %v1995, %v2011
        %v2028 = vmax.f32 %v2012, 0.0
        %v2029 = vmax.f32 %v2013, 0.0
        %v2030 = vmax.f32 %v2014, 0.0
        %v2031 = vmax.f32 %v2015, 0.0
        %v2032 = vmax.f32 %v2016, 0.0
        %v2033 = vmax.f32 %v2017, 0.0
        %v2034 = vmax.f32 %v2018, 0.0
        %v2035 = vmax.f32 %v2019, 0.0
        %v2036 = vmax.f32 %v2020, 0.0
        %v2037 = vmax.f32 %v2021, 0.0
        %v2038 = vmax.f32 %v2022, 0.0
        %v2039 = vmax.f32 %v2023, 0.0
        %v2040 = vmax.f32 %v2024, 0.0
        %v2041 = vmax.f32 %v2025, 0.0
        %v2042 = vmax.f32 %v2026, 0.0
        %v2043 = vmax.f32 %v2027, 0.0
        %v2044 = vpack.c.bf16 %v2029, %v2028
        %v2045 = vpack.c.bf16 %v2031, %v2030
        %v2046 = vpack.c.bf16 %v2033, %v2032
        %v2047 = vpack.c.bf16 %v2035, %v2034
        %v2048 = vpack.c.bf16 %v2037, %v2036
        %v2049 = vpack.c.bf16 %v2039, %v2038
        %v2050 = vpack.c.bf16 %v2041, %v2040
        %v2051 = vpack.c.bf16 %v2043, %v2042
        %v2052 = vld [vmem:[#allocation2 + $0x20] sm:$0xf]
        %v2053 = vld [vmem:[#allocation2 + $0x44] sm:$0xf]
        %v2054 = vld [vmem:[%s3 + $0x8] sm:$0x1]
        %v2056 = vlaneseq
        %v2057 = vshrl.u32 %v2056, 7
        %v2058 = vsub.s32 0, %v2057
        %v2059 = vrot.slane %v2054, %v2058
        %v2063 = vunpack.c.l.b16 %v2052
        %v2064 = vunpack.c.l.b16 %v2053
        %v2065 = vpack.c.b16 %v2064, %v2063
        %v2068 = vsel %vm317, %v2044, 0
        %v2071 = vsel %vm317, %v2045, 0
        %v2074 = vsel %vm317, %v2046, 0
        %v2077 = vsel %vm317, %v2047, 0
        %v2080 = vsel %vm317, %v2048, 0
        %v2083 = vsel %vm317, %v2049, 0
        %v2086 = vsel %vm317, %v2050, 0
        %v2089 = vsel %vm317, %v2051, 0
        %2091 = vmatprep.subr.bf16.mxu0 0
        %2092 = vmatpush1.bf16.msra.mxu0 %v2065
        %2093 = vmatprep.subr.bf16.mxu0 0
        %2094 = vmatpush1.bf16.msra.mxu0 0
        %2095 = vmatprep.subr.bf16.mxu0 0
        %2096 = vmatpush1.bf16.msra.mxu0 0
        %2097 = vmatprep.subr.bf16.mxu0 0
        %2098 = vmatpush1.bf16.msra.mxu0 0
        %2099 = vmatprep.subr.bf16.mxu0 0
        %2100 = vmatpush1.bf16.msra.mxu0 0
        %2101 = vmatprep.subr.bf16.mxu0 0
        %2102 = vmatpush1.bf16.msra.mxu0 0
        %2103 = vmatprep.subr.bf16.mxu0 0
        %2104 = vmatpush1.bf16.msra.mxu0 0
        %2105 = vmatprep.subr.bf16.mxu0 0
        %2106 = vmatpush1.bf16.msra.mxu0 0
        %2107 = vmatprep.subr.bf16.mxu0 0
        %2108 = vmatpush1.bf16.msra.mxu0 0
        %2109 = vmatprep.subr.bf16.mxu0 0
        %2110 = vmatpush1.bf16.msra.mxu0 0
        %2111 = vmatprep.subr.bf16.mxu0 0
        %2112 = vmatpush1.bf16.msra.mxu0 0
        %2113 = vmatprep.subr.bf16.mxu0 0
        %2114 = vmatpush1.bf16.msra.mxu0 0
        %2115 = vmatprep.subr.bf16.mxu0 0
        %2116 = vmatpush1.bf16.msra.mxu0 0
        %2117 = vmatprep.subr.bf16.mxu0 0
        %2118 = vmatpush1.bf16.msra.mxu0 0
        %2119 = vmatprep.subr.bf16.mxu0 0
        %2120 = vmatpush1.bf16.msra.mxu0 0
        %2121 = vmatprep.subr.bf16.mxu0 0
        %2122 = vmatpush1.bf16.msra.mxu0 0
        %2123 = vmatprep.mubr.bf16.mxu0 0
        %2124 = vmatmul.mubr.bf16.gmra.mrb[0].mxu0 %v2068
        %v2125 = vpop.f32.mrb[0].mxu0
        %v2126 = vadd.f32 %v2059, %v2125
        %v2127 = vpop.f32.mrb[0].mxu0
        %v2128 = vpop.f32.mrb[0].mxu0
        %v2129 = vadd.f32 %v2059, %v2128
        %v2130 = vpop.f32.mrb[0].mxu0
        %2131 = vmatprep.mubr.bf16.mxu0 0
        %2132 = vmatmul.mubr.bf16.gmra.mrb[0].mxu0 %v2071
        %v2133 = vpop.f32.mrb[0].mxu0
        %v2134 = vadd.f32 %v2059, %v2133
        %v2135 = vpop.f32.mrb[0].mxu0
        %v2136 = vpop.f32.mrb[0].mxu0
        %v2137 = vadd.f32 %v2059, %v2136
        %v2138 = vpop.f32.mrb[0].mxu0
        %2139 = vmatprep.mubr.bf16.mxu0 0
        %2140 = vmatmul.mubr.bf16.gmra.mrb[0].mxu0 %v2074
        %v2141 = vpop.f32.mrb[0].mxu0
        %v2142 = vadd.f32 %v2059, %v2141
        %v2143 = vpop.f32.mrb[0].mxu0
        %v2144 = vpop.f32.mrb[0].mxu0
        %v2145 = vadd.f32 %v2059, %v2144
        %v2146 = vpop.f32.mrb[0].mxu0
        %2147 = vmatprep.mubr.bf16.mxu0 0
        %2148 = vmatmul.mubr.bf16.gmra.mrb[0].mxu0 %v2077
        %v2149 = vpop.f32.mrb[0].mxu0
        %v2150 = vadd.f32 %v2059, %v2149
        %v2151 = vpop.f32.mrb[0].mxu0
        %v2152 = vpop.f32.mrb[0].mxu0
        %v2153 = vadd.f32 %v2059, %v2152
        %v2154 = vpop.f32.mrb[0].mxu0
        %2155 = vmatprep.mubr.bf16.mxu0 0
        %2156 = vmatmul.mubr.bf16.gmra.mrb[0].mxu0 %v2080
        %v2157 = vpop.f32.mrb[0].mxu0
        %v2158 = vadd.f32 %v2059, %v2157
        %v2159 = vpop.f32.mrb[0].mxu0
        %v2160 = vpop.f32.mrb[0].mxu0
        %v2161 = vadd.f32 %v2059, %v2160
        %v2162 = vpop.f32.mrb[0].mxu0
        %2163 = vmatprep.mubr.bf16.mxu0 0
        %2164 = vmatmul.mubr.bf16.gmra.mrb[0].mxu0 %v2083
        %v2165 = vpop.f32.mrb[0].mxu0
        %v2166 = vadd.f32 %v2059, %v2165
        %v2167 = vpop.f32.mrb[0].mxu0
        %v2168 = vpop.f32.mrb[0].mxu0
        %v2169 = vadd.f32 %v2059, %v2168
        %v2170 = vpop.f32.mrb[0].mxu0
        %2171 = vmatprep.mubr.bf16.mxu0 0
        %2172 = vmatmul.mubr.bf16.gmra.mrb[0].mxu0 %v2086
        %v2173 = vpop.f32.mrb[0].mxu0
        %v2174 = vadd.f32 %v2059, %v2173
        %v2175 = vpop.f32.mrb[0].mxu0
        %v2176 = vpop.f32.mrb[0].mxu0
        %v2177 = vadd.f32 %v2059, %v2176
        %v2178 = vpop.f32.mrb[0].mxu0
        %2179 = vmatprep.mubr.bf16.mxu0 0
        %2180 = vmatmul.mubr.bf16.gmra.mrb[0].mxu0 %v2089
        %v2181 = vpop.f32.mrb[0].mxu0
        %v2182 = vadd.f32 %v2059, %v2181
        %v2183 = vpop.f32.mrb[0].mxu0
        %v2184 = vpop.f32.mrb[0].mxu0
        %v2185 = vadd.f32 %v2059, %v2184
        %v2186 = vpop.f32.mrb[0].mxu0
        %2187 = vdwg.mxu0
        %2188 = vst [vmem:[%s222] sm:$0xff] %v2126
        %2189 = vst [vmem:[%s222 + $0x8] sm:$0xff] %v2129
        %2190 = vst [vmem:[%s222 + $0x10] sm:$0xff] %v2134
        %2191 = vst [vmem:[%s222 + $0x18] sm:$0xff] %v2137
        %2192 = vst [vmem:[%s222 + $0x20] sm:$0xff] %v2142
        %2193 = vst [vmem:[%s222 + $0x28] sm:$0xff] %v2145
        %2194 = vst [vmem:[%s222 + $0x30] sm:$0xff] %v2150
        %2195 = vst [vmem:[%s222 + $0x38] sm:$0xff] %v2153
        %2196 = vst [vmem:[%s222 + $0x40] sm:$0xff] %v2158
        %2197 = vst [vmem:[%s222 + $0x48] sm:$0xff] %v2161
        %2198 = vst [vmem:[%s222 + $0x50] sm:$0xff] %v2166
        %2199 = vst [vmem:[%s222 + $0x58] sm:$0xff] %v2169
        %2200 = vst [vmem:[%s222 + $0x60] sm:$0xff] %v2174
        %2201 = vst [vmem:[%s222 + $0x68] sm:$0xff] %v2177
        %2202 = vst [vmem:[%s222 + $0x70] sm:$0xff] %v2182
        %2203 = vst [vmem:[%s222 + $0x78] sm:$0xff] %v2185
        %s2204 = sand.u32 %s121, 1
        %s2205 = scalar_lea.sflag [#allocation4], %s2204
        %s2206 = sand.u32 %s121, 1
        %s2207 = smul.addr %s2206, 128
        %s2208 = scalar_lea.vmem [#allocation5], %s2207
        // Predicated region
        $region41: #{tpu_custom_call.1} parent=35 // pred_check
          %p2209 = pneg %p131
        $region42: #{tpu_custom_call.1} parent=35 // pred_check_branch
          %2211 = sbr.rel (%p2209) target = $region44
        $region43: #{tpu_custom_call.1} parent=35 // pred_region
          %s2212 = smul.u32 16, %s19
          %s2214 = ssub.s32 2048, 2048
          %2215 = vsyncadd %s2205, %s2214
          %s2216 = smul.addr %s2212, 128
          %s2217 = scalar_lea.hbm %s4, %s2216
          %s2218 = sshll.u32 %s2208, 4
          %s2219 = int_to_ptr.vmem [resolvable:$true] %s2218
          %2224 = dma.vmem_to_hbm [thread:$0]  %s2219, 2048, %s2217, %s2205, 128, 128, 8
        $region44: #{tpu_custom_call.1} parent=35 // pred_fallthru
          _
      $region36: #{tpu_custom_call.1} parent=5 // pred_fallthru
        _
      %p2225 = scmp.le.s32.totalorder 2, %s14
      // Predicated region
      $region45: #{tpu_custom_call.1} parent=5 // pred_check
        %p2226 = pneg %p2225
      $region46: #{tpu_custom_call.1} parent=5 // pred_check_branch
        %2228 = sbr.rel (%p2226) target = $region48
      $region47: #{tpu_custom_call.1} parent=5 // pred_region
        %s2229 = ssub.s32 %s14, 2
        // Predicated region
        $region49: #{tpu_custom_call.1} parent=47 // pred_check
          %p2230 = pneg %p137
        $region50: #{tpu_custom_call.1} parent=47 // pred_check_branch
          %2232 = sbr.rel (%p2230) target = $region52
        $region51: #{tpu_custom_call.1} parent=47 // pred_region
          %s2233 = sand.u32 %s122, 1
          %s2234 = scalar_lea.sflag [#allocation4], %s2233
          %s2235 = sand.u32 %s122, 1
          %s2236 = smul.addr %s2235, 128
          %s2237 = scalar_lea.vmem [#allocation5], %s2236
          %2238 = dma.done %s2234, 2048
        $region52: #{tpu_custom_call.1} parent=47 // pred_fallthru
          _
      $region48: #{tpu_custom_call.1} parent=5 // pred_fallthru
        _
    $region6: #{tpu_custom_call.1} parent=1 // loop_footer
      %s18 = sadd.s32 1, %s14
    $region7: #{tpu_custom_call.1} parent=1 // loop_footer_branch
      %13 = sbr.rel target = $region3
    $region8: #{tpu_custom_call.1} parent=1 // loop_exit
      _
    %2239 = vsyncpa [#allocation3], 1
    %s2240 = scalar_lea.sflag [#allocation3], 1
    %2241 = vsyncpa %s2240, 1
    %2242 = vsyncpa [#allocation4], 1
    %s2243 = scalar_lea.sflag [#allocation4], 1
    %2244 = vsyncpa %s2243, 1

</llo_original>
